<compile_context>
chip_gen: v7x
topology: tpu7x:2x2x1
jax: 0.10.0
libtpu: 0.0.40
codegen_flags: <defaults>
</compile_context>

<pallas_src>
import math

import jax
import jax.numpy as jnp
from jax import lax
from jax.experimental import pallas as pl
from jax.experimental.pallas import tpu as pltpu


# ----------------------------------------------------------------------------
# Packed-parameter layout (shared by wrapper packing and kernel unpacking).
# Weights are stored row-major in PyTorch Conv2d order: W[out_c, in_c].
# ----------------------------------------------------------------------------
_PARAM_ORDER = ["W1", "c1", "W2", "c2", "W3", "c3",
                "Wf11", "cf11", "Wf12", "cf12", "Wf13", "cf13",
                "Wf21", "cf21", "Wf22", "cf22", "Wf23", "cf23"]


def _param_layout(C):
    bc = C // 2
    sizes = {
        "W1": bc * C, "c1": bc, "W2": bc * C, "c2": bc, "W3": bc * C, "c3": bc,
        "Wf11": C, "cf11": 1, "Wf12": 1, "cf12": 1, "Wf13": 1, "cf13": 1,
        "Wf21": C * (bc + 1), "cf21": C,
        "Wf22": C * C, "cf22": C,
        "Wf23": C * C, "cf23": C,
    }
    offs, cur = {}, 0
    for name in _PARAM_ORDER:
        offs[name] = cur
        cur += sizes[name]
    return offs, cur


def pack_params(p, C):
    offs, total = _param_layout(C)
    flat = jnp.concatenate(
        [jnp.ravel(p[name]).astype(jnp.float32) for name in _PARAM_ORDER])
    assert flat.shape[0] == total
    return flat


# ----------------------------------------------------------------------------
# Kernel
# ----------------------------------------------------------------------------
def ernb_kernel(params_ref, x_ref, o_ref):
    # params_ref : flat f32 vector in SMEM (scalar prefetch)
    # x_ref/o_ref: (C, SR, 128) per-channel dense pixel tiles in VMEM
    C, SR, _LW = x_ref.shape
    bc = C // 2
    f32 = jnp.float32
    offs, _ = _param_layout(C)

    # --- hoist every scalar weight out of SMEM once (NOT per chunk) ---------
    def w(name, i=0):
        return params_ref[offs[name] + i]

    W1 = [w("W1", i) for i in range(bc * C)]
    c1 = [w("c1", i) for i in range(bc)]
    W2 = [w("W2", i) for i in range(bc * C)]
    c2 = [w("c2", i) for i in range(bc)]
    W3 = [w("W3", i) for i in range(bc * C)]
    c3 = [w("c3", i) for i in range(bc)]
    Wf11 = [w("Wf11", i) for i in range(C)]
    cf11 = [w("cf11", 0)]
    Wf12, cf12 = w("Wf12"), w("cf12")
    Wf13, cf13 = w("Wf13"), w("cf13")
    Wf21 = [w("Wf21", i) for i in range(C * (bc + 1))]
    cf21 = [w("cf21", i) for i in range(C)]
    Wf22 = [w("Wf22", i) for i in range(C * C)]
    cf22 = [w("cf22", i) for i in range(C)]
    Wf23 = [w("Wf23", i) for i in range(C * C)]
    cf23 = [w("cf23", i) for i in range(C)]

    def recip(d):
        # EUP approx reciprocal + one Newton step: cheaper than a full f32
        # divide (which adds a multi-step VPU refinement) yet ~1e-7 accurate.
        r = pl.reciprocal(d, approx=True)
        return r * (2.0 - d * r)

    def mish(z):
        # mish(z) = z * tanh(softplus(z)); single exp, stable via e^{-|z|},
        # num/den CSE'd (den = num + correction).
        v = jnp.exp(-jnp.abs(z))
        v2 = v * v
        tv = 2.0 * v
        pos = z >= 0.0
        num = tv + jnp.where(pos, 1.0, v2)
        den = num + jnp.where(pos, 2.0 * v2, 2.0)
        return z * num * recip(den)

    def conv_mish(inputs, Wm, bias, out_c):
        in_c = len(inputs)
        outs = []
        for o in range(out_c):
            acc = inputs[0] * Wm[o * in_c]
            for i in range(1, in_c):
                acc = acc + inputs[i] * Wm[o * in_c + i]
            outs.append(mish(acc + bias[o]))
        return outs

    # --- strip-mine: vreg-resident row chunks over the big VMEM tile --------
    RR = math.gcd(SR, 8)          # 8 sublanes => 1 f32 vreg per live plane
    n_chunks = SR // RR

    def process(r0):
        x = [x_ref[c, pl.ds(r0, RR), :].astype(f32) for c in range(C)]

        # three 1x1 branches + Mish
        b1 = conv_mish(x, W1, c1, bc)
        b2 = conv_mish(x, W2, c2, bc)
        b3 = conv_mish(x, W3, c3, bc)

        # FeatureFusion 1: input = cat(b1, b2) (C channels) -> 1 channel
        h1 = conv_mish(b1 + b2, Wf11, cf11, 1)[0]
        t1 = mish(h1 * Wf12 + cf12)
        f1 = t1 * Wf13 + cf13 + h1

        # FeatureFusion 2: input = cat(f1, b3) (bc+1 channels) -> C channels
        h2 = conv_mish([f1] + b3, Wf21, cf21, C)
        t2 = conv_mish(h2, Wf22, cf22, C)

        # ff2.conv3 (no activation) + hold (h2) + outer residual (x)
        for o in range(C):
            acc = t2[0] * Wf23[o * C]
            for i in range(1, C):
                acc = acc + t2[i] * Wf23[o * C + i]
            o_ref[o, pl.ds(r0, RR), :] = (
                acc + cf23[o] + h2[o] + x[o]).astype(o_ref.dtype)

    if n_chunks == 1:
        process(0)
    else:
        def chunk_body(s, carry):
            process(pl.multiple_of(s * RR, RR))
            return carry
        # modest unroll: cross-iteration scheduler visibility without blowing
        # the 64-vreg file (~15 live planes * 1 vreg * 2 iters < 48 vregs).
        lax.fori_loop(0, n_chunks, chunk_body, 0, unroll=2)


# ----------------------------------------------------------------------------
# Wrapper
# ----------------------------------------------------------------------------
def ernb_pallas(x_nchw, packed_params, *, max_rows=512):
    N, C, H, W = x_nchw.shape
    HW = H * W
    LW = 128
    ROW_ALIGN = 8

    # Pad pixels to a multiple of 8*128 so every tile is lane- and
    # sublane-dense (unmasked vld/vst); slice the padding off afterwards.
    HW_pad = ((HW + LW * ROW_ALIGN - 1) // (LW * ROW_ALIGN)) * (LW * ROW_ALIGN)
    x_flat = x_nchw.reshape(N, C, HW)
    if HW_pad != HW:
        x_flat = jnp.pad(x_flat, ((0, 0), (0, 0), (0, HW_pad - HW)))
    R = HW_pad // LW
    x_r = x_flat.reshape(N, C, R, LW)

    # Big row tiles for DMA / grid-step efficiency; vreg pressure is handled
    # by the in-kernel strip-mine loop, NOT by shrinking the tile.
    n_tiles = max(1, pl.cdiv(R, max_rows))
    if N * n_tiles == 1 and R > ROW_ALIGN:
        n_tiles = 2                      # give the 2nd TensorCore (v7x) work
    elif (N % 2 == 1) and (n_tiles % 2 == 1) and n_tiles > 1:
        n_tiles += 1                     # even total step count for 2 TCs
    SR = ((pl.cdiv(R, n_tiles) + ROW_ALIGN - 1) // ROW_ALIGN) * ROW_ALIGN
    SR = min(R, max(ROW_ALIGN, SR))

    grid = (N, pl.cdiv(R, SR))
    pix_spec = pl.BlockSpec((None, C, SR, LW), lambda n, r, _params: (n, 0, r, 0))

    out = pl.pallas_call(
        ernb_kernel,
        out_shape=jax.ShapeDtypeStruct((N, C, R, LW), x_nchw.dtype),
        grid_spec=pltpu.PrefetchScalarGridSpec(
            num_scalar_prefetch=1,           # packed weights -> SMEM, once
            grid=grid,
            in_specs=[pix_spec],
            out_specs=pix_spec,
        ),
        compiler_params=pltpu.CompilerParams(
            dimension_semantics=("parallel", "parallel"),
            vmem_limit_bytes=32 * 1024 * 1024,
        ),
    )(packed_params, x_r)

    out_flat = out.reshape(N, C, HW_pad)
    if HW_pad != HW:
        out_flat = out_flat[:, :, :HW]
    return out_flat.reshape(N, C, H, W)


# ----------------------------------------------------------------------------
# Deterministic parameter construction (PyTorch Conv2d shapes, kernel_size=1).
# ----------------------------------------------------------------------------
def init_params(key, in_chan):
    bc = in_chan // 2

    def conv_init(key, out_c, in_c):
        kw, kb = jax.random.split(key)
        bound = 1.0 / jnp.sqrt(in_c)
        w = jax.random.uniform(kw, (out_c, in_c), jnp.float32, -bound, bound)
        b = jax.random.uniform(kb, (out_c,), jnp.float32, -bound, bound)
        return w, b

    keys = jax.random.split(key, 9)
    p = {}
    p["W1"], p["c1"] = conv_init(keys[0], bc, in_chan)          # branch1
    p["W2"], p["c2"] = conv_init(keys[1], bc, in_chan)          # branch2
    p["W3"], p["c3"] = conv_init(keys[2], bc, in_chan)          # branch3
    p["Wf11"], p["cf11"] = conv_init(keys[3], 1, in_chan)       # ff1.conv1
    p["Wf12"], p["cf12"] = conv_init(keys[4], 1, 1)             # ff1.conv2
    p["Wf13"], p["cf13"] = conv_init(keys[5], 1, 1)             # ff1.conv3
    p["Wf21"], p["cf21"] = conv_init(keys[6], in_chan, bc + 1)  # ff2.conv1
    p["Wf22"], p["cf22"] = conv_init(keys[7], in_chan, in_chan) # ff2.conv2
    p["Wf23"], p["cf23"] = conv_init(keys[8], in_chan, in_chan) # ff2.conv3

    return p, pack_params(p, in_chan)


# ----------------------------------------------------------------------------
# Pure-JAX reference (mirrors the PyTorch forward exactly) for validation.
# ----------------------------------------------------------------------------
def _mish_ref(x):
    sp = jnp.maximum(x, 0.0) + jnp.log1p(jnp.exp(-jnp.abs(x)))
    return x * jnp.tanh(sp)


def ernb_reference(x_nchw, p):
    N, C, H, W = x_nchw.shape
    x = jnp.transpose(x_nchw, (0, 2, 3, 1)).reshape(-1, C)       # (M, C)

    conv = lambda a, Wm, b: a @ Wm.T + b[None, :]
    b1 = _mish_ref(conv(x, p['W1'], p['c1']))
    b2 = _mish_ref(conv(x, p['W2'], p['c2']))
    b3 = _mish_ref(conv(x, p['W3'], p['c3']))
    s1 = jnp.concatenate([b1, b2], axis=1)
    h1 = _mish_ref(conv(s1, p['Wf11'], p['cf11']))
    t1 = _mish_ref(conv(h1, p['Wf12'], p['cf12']))
    t1 = conv(t1, p['Wf13'], p['cf13'])
    f1 = t1 + h1
    s2 = jnp.concatenate([f1, b3], axis=1)
    h2 = _mish_ref(conv(s2, p['Wf21'], p['cf21']))
    t2 = _mish_ref(conv(h2, p['Wf22'], p['cf22']))
    t2 = conv(t2, p['Wf23'], p['cf23'])
    f2 = t2 + h2
    out = f2 + x
    return jnp.transpose(out.reshape(N, H, W, C), (0, 3, 1, 2))


if __name__ == "__main__":
    key = jax.random.PRNGKey(0)
    k_x, k_p = jax.random.split(key)

    N, C, H, W = 2, 4, 16, 16          # in_chan = 4 -> branch_chan = 2
    x = jax.random.normal(k_x, (N, C, H, W), jnp.float32)

    torch_params, packed_params = init_params(k_p, C)

    ref = ernb_reference(x, torch_params)

    out = ernb_pallas(x, packed_params)
    out = jax.block_until_ready(out)

    assert out.shape == (N, C, H, W)
    err = jnp.max(jnp.abs(out - ref))
    assert jnp.allclose(out, ref, rtol=1e-4, atol=1e-4), f"max abs err = {err}"

    print("KERNEL_OK")
</pallas_src>

<mosaic_0001>
module attributes {stable_mosaic.version = 11 : i64} {
  func.func @ernb_kernel(%arg0: i32, %arg1: i32, %arg2: memref<95xf32, #tpu.memory_space<smem>>, %arg3: memref<1x4x8x128xf32, #tpu.memory_space<vmem>>, %arg4: memref<1x4x8x128xf32, #tpu.memory_space<vmem>>) attributes {dimension_semantics = [#tpu.dimension_semantics<parallel>, #tpu.dimension_semantics<parallel>], iteration_bounds = array<i64: 2, 1>, scalar_prefetch = 1 : i64, scratch_operands = 0 : i64, tpu.core_type = #tpu.core_type<tc>, window_params = [{transform_indices = @transform_0, window_bounds = array<i64: 1, 4, 8, 128>}, {transform_indices = @transform_1, window_bounds = array<i64: 1, 4, 8, 128>}]} {
    %c0 = arith.constant 0 : index
    %0 = memref.load %arg2[%c0] : memref<95xf32, #tpu.memory_space<smem>>
    %c1 = arith.constant 1 : index
    %1 = memref.load %arg2[%c1] : memref<95xf32, #tpu.memory_space<smem>>
    %c2 = arith.constant 2 : index
    %2 = memref.load %arg2[%c2] : memref<95xf32, #tpu.memory_space<smem>>
    %c3 = arith.constant 3 : index
    %3 = memref.load %arg2[%c3] : memref<95xf32, #tpu.memory_space<smem>>
    %c4 = arith.constant 4 : index
    %4 = memref.load %arg2[%c4] : memref<95xf32, #tpu.memory_space<smem>>
    %c5 = arith.constant 5 : index
    %5 = memref.load %arg2[%c5] : memref<95xf32, #tpu.memory_space<smem>>
    %c6 = arith.constant 6 : index
    %6 = memref.load %arg2[%c6] : memref<95xf32, #tpu.memory_space<smem>>
    %c7 = arith.constant 7 : index
    %7 = memref.load %arg2[%c7] : memref<95xf32, #tpu.memory_space<smem>>
    %c8 = arith.constant 8 : index
    %8 = memref.load %arg2[%c8] : memref<95xf32, #tpu.memory_space<smem>>
    %c9 = arith.constant 9 : index
    %9 = memref.load %arg2[%c9] : memref<95xf32, #tpu.memory_space<smem>>
    %c10 = arith.constant 10 : index
    %10 = memref.load %arg2[%c10] : memref<95xf32, #tpu.memory_space<smem>>
    %c11 = arith.constant 11 : index
    %11 = memref.load %arg2[%c11] : memref<95xf32, #tpu.memory_space<smem>>
    %c12 = arith.constant 12 : index
    %12 = memref.load %arg2[%c12] : memref<95xf32, #tpu.memory_space<smem>>
    %c13 = arith.constant 13 : index
    %13 = memref.load %arg2[%c13] : memref<95xf32, #tpu.memory_space<smem>>
    %c14 = arith.constant 14 : index
    %14 = memref.load %arg2[%c14] : memref<95xf32, #tpu.memory_space<smem>>
    %c15 = arith.constant 15 : index
    %15 = memref.load %arg2[%c15] : memref<95xf32, #tpu.memory_space<smem>>
    %c16 = arith.constant 16 : index
    %16 = memref.load %arg2[%c16] : memref<95xf32, #tpu.memory_space<smem>>
    %c17 = arith.constant 17 : index
    %17 = memref.load %arg2[%c17] : memref<95xf32, #tpu.memory_space<smem>>
    %c18 = arith.constant 18 : index
    %18 = memref.load %arg2[%c18] : memref<95xf32, #tpu.memory_space<smem>>
    %c19 = arith.constant 19 : index
    %19 = memref.load %arg2[%c19] : memref<95xf32, #tpu.memory_space<smem>>
    %c20 = arith.constant 20 : index
    %20 = memref.load %arg2[%c20] : memref<95xf32, #tpu.memory_space<smem>>
    %c21 = arith.constant 21 : index
    %21 = memref.load %arg2[%c21] : memref<95xf32, #tpu.memory_space<smem>>
    %c22 = arith.constant 22 : index
    %22 = memref.load %arg2[%c22] : memref<95xf32, #tpu.memory_space<smem>>
    %c23 = arith.constant 23 : index
    %23 = memref.load %arg2[%c23] : memref<95xf32, #tpu.memory_space<smem>>
    %c24 = arith.constant 24 : index
    %24 = memref.load %arg2[%c24] : memref<95xf32, #tpu.memory_space<smem>>
    %c25 = arith.constant 25 : index
    %25 = memref.load %arg2[%c25] : memref<95xf32, #tpu.memory_space<smem>>
    %c26 = arith.constant 26 : index
    %26 = memref.load %arg2[%c26] : memref<95xf32, #tpu.memory_space<smem>>
    %c27 = arith.constant 27 : index
    %27 = memref.load %arg2[%c27] : memref<95xf32, #tpu.memory_space<smem>>
    %c28 = arith.constant 28 : index
    %28 = memref.load %arg2[%c28] : memref<95xf32, #tpu.memory_space<smem>>
    %c29 = arith.constant 29 : index
    %29 = memref.load %arg2[%c29] : memref<95xf32, #tpu.memory_space<smem>>
    %c30 = arith.constant 30 : index
    %30 = memref.load %arg2[%c30] : memref<95xf32, #tpu.memory_space<smem>>
    %c31 = arith.constant 31 : index
    %31 = memref.load %arg2[%c31] : memref<95xf32, #tpu.memory_space<smem>>
    %c32 = arith.constant 32 : index
    %32 = memref.load %arg2[%c32] : memref<95xf32, #tpu.memory_space<smem>>
    %c33 = arith.constant 33 : index
    %33 = memref.load %arg2[%c33] : memref<95xf32, #tpu.memory_space<smem>>
    %c34 = arith.constant 34 : index
    %34 = memref.load %arg2[%c34] : memref<95xf32, #tpu.memory_space<smem>>
    %c35 = arith.constant 35 : index
    %35 = memref.load %arg2[%c35] : memref<95xf32, #tpu.memory_space<smem>>
    %c36 = arith.constant 36 : index
    %36 = memref.load %arg2[%c36] : memref<95xf32, #tpu.memory_space<smem>>
    %c37 = arith.constant 37 : index
    %37 = memref.load %arg2[%c37] : memref<95xf32, #tpu.memory_space<smem>>
    %c38 = arith.constant 38 : index
    %38 = memref.load %arg2[%c38] : memref<95xf32, #tpu.memory_space<smem>>
    %c39 = arith.constant 39 : index
    %39 = memref.load %arg2[%c39] : memref<95xf32, #tpu.memory_space<smem>>
    %c40 = arith.constant 40 : index
    %40 = memref.load %arg2[%c40] : memref<95xf32, #tpu.memory_space<smem>>
    %c41 = arith.constant 41 : index
    %41 = memref.load %arg2[%c41] : memref<95xf32, #tpu.memory_space<smem>>
    %c42 = arith.constant 42 : index
    %42 = memref.load %arg2[%c42] : memref<95xf32, #tpu.memory_space<smem>>
    %c43 = arith.constant 43 : index
    %43 = memref.load %arg2[%c43] : memref<95xf32, #tpu.memory_space<smem>>
    %c44 = arith.constant 44 : index
    %44 = memref.load %arg2[%c44] : memref<95xf32, #tpu.memory_space<smem>>
    %c45 = arith.constant 45 : index
    %45 = memref.load %arg2[%c45] : memref<95xf32, #tpu.memory_space<smem>>
    %c46 = arith.constant 46 : index
    %46 = memref.load %arg2[%c46] : memref<95xf32, #tpu.memory_space<smem>>
    %c47 = arith.constant 47 : index
    %47 = memref.load %arg2[%c47] : memref<95xf32, #tpu.memory_space<smem>>
    %c48 = arith.constant 48 : index
    %48 = memref.load %arg2[%c48] : memref<95xf32, #tpu.memory_space<smem>>
    %c49 = arith.constant 49 : index
    %49 = memref.load %arg2[%c49] : memref<95xf32, #tpu.memory_space<smem>>
    %c50 = arith.constant 50 : index
    %50 = memref.load %arg2[%c50] : memref<95xf32, #tpu.memory_space<smem>>
    %c51 = arith.constant 51 : index
    %51 = memref.load %arg2[%c51] : memref<95xf32, #tpu.memory_space<smem>>
    %c52 = arith.constant 52 : index
    %52 = memref.load %arg2[%c52] : memref<95xf32, #tpu.memory_space<smem>>
    %c53 = arith.constant 53 : index
    %53 = memref.load %arg2[%c53] : memref<95xf32, #tpu.memory_space<smem>>
    %c54 = arith.constant 54 : index
    %54 = memref.load %arg2[%c54] : memref<95xf32, #tpu.memory_space<smem>>
    %c55 = arith.constant 55 : index
    %55 = memref.load %arg2[%c55] : memref<95xf32, #tpu.memory_space<smem>>
    %c56 = arith.constant 56 : index
    %56 = memref.load %arg2[%c56] : memref<95xf32, #tpu.memory_space<smem>>
    %c57 = arith.constant 57 : index
    %57 = memref.load %arg2[%c57] : memref<95xf32, #tpu.memory_space<smem>>
    %c58 = arith.constant 58 : index
    %58 = memref.load %arg2[%c58] : memref<95xf32, #tpu.memory_space<smem>>
    %c59 = arith.constant 59 : index
    %59 = memref.load %arg2[%c59] : memref<95xf32, #tpu.memory_space<smem>>
    %c60 = arith.constant 60 : index
    %60 = memref.load %arg2[%c60] : memref<95xf32, #tpu.memory_space<smem>>
    %c61 = arith.constant 61 : index
    %61 = memref.load %arg2[%c61] : memref<95xf32, #tpu.memory_space<smem>>
    %c62 = arith.constant 62 : index
    %62 = memref.load %arg2[%c62] : memref<95xf32, #tpu.memory_space<smem>>
    %c63 = arith.constant 63 : index
    %63 = memref.load %arg2[%c63] : memref<95xf32, #tpu.memory_space<smem>>
    %c64 = arith.constant 64 : index
    %64 = memref.load %arg2[%c64] : memref<95xf32, #tpu.memory_space<smem>>
    %c65 = arith.constant 65 : index
    %65 = memref.load %arg2[%c65] : memref<95xf32, #tpu.memory_space<smem>>
    %c66 = arith.constant 66 : index
    %66 = memref.load %arg2[%c66] : memref<95xf32, #tpu.memory_space<smem>>
    %c67 = arith.constant 67 : index
    %67 = memref.load %arg2[%c67] : memref<95xf32, #tpu.memory_space<smem>>
    %c68 = arith.constant 68 : index
    %68 = memref.load %arg2[%c68] : memref<95xf32, #tpu.memory_space<smem>>
    %c69 = arith.constant 69 : index
    %69 = memref.load %arg2[%c69] : memref<95xf32, #tpu.memory_space<smem>>
    %c70 = arith.constant 70 : index
    %70 = memref.load %arg2[%c70] : memref<95xf32, #tpu.memory_space<smem>>
    %c71 = arith.constant 71 : index
    %71 = memref.load %arg2[%c71] : memref<95xf32, #tpu.memory_space<smem>>
    %c72 = arith.constant 72 : index
    %72 = memref.load %arg2[%c72] : memref<95xf32, #tpu.memory_space<smem>>
    %c73 = arith.constant 73 : index
    %73 = memref.load %arg2[%c73] : memref<95xf32, #tpu.memory_space<smem>>
    %c74 = arith.constant 74 : index
    %74 = memref.load %arg2[%c74] : memref<95xf32, #tpu.memory_space<smem>>
    %c75 = arith.constant 75 : index
    %75 = memref.load %arg2[%c75] : memref<95xf32, #tpu.memory_space<smem>>
    %c76 = arith.constant 76 : index
    %76 = memref.load %arg2[%c76] : memref<95xf32, #tpu.memory_space<smem>>
    %c77 = arith.constant 77 : index
    %77 = memref.load %arg2[%c77] : memref<95xf32, #tpu.memory_space<smem>>
    %c78 = arith.constant 78 : index
    %78 = memref.load %arg2[%c78] : memref<95xf32, #tpu.memory_space<smem>>
    %c79 = arith.constant 79 : index
    %79 = memref.load %arg2[%c79] : memref<95xf32, #tpu.memory_space<smem>>
    %c80 = arith.constant 80 : index
    %80 = memref.load %arg2[%c80] : memref<95xf32, #tpu.memory_space<smem>>
    %c81 = arith.constant 81 : index
    %81 = memref.load %arg2[%c81] : memref<95xf32, #tpu.memory_space<smem>>
    %c82 = arith.constant 82 : index
    %82 = memref.load %arg2[%c82] : memref<95xf32, #tpu.memory_space<smem>>
    %c83 = arith.constant 83 : index
    %83 = memref.load %arg2[%c83] : memref<95xf32, #tpu.memory_space<smem>>
    %c84 = arith.constant 84 : index
    %84 = memref.load %arg2[%c84] : memref<95xf32, #tpu.memory_space<smem>>
    %c85 = arith.constant 85 : index
    %85 = memref.load %arg2[%c85] : memref<95xf32, #tpu.memory_space<smem>>
    %c86 = arith.constant 86 : index
    %86 = memref.load %arg2[%c86] : memref<95xf32, #tpu.memory_space<smem>>
    %c87 = arith.constant 87 : index
    %87 = memref.load %arg2[%c87] : memref<95xf32, #tpu.memory_space<smem>>
    %c88 = arith.constant 88 : index
    %88 = memref.load %arg2[%c88] : memref<95xf32, #tpu.memory_space<smem>>
    %c89 = arith.constant 89 : index
    %89 = memref.load %arg2[%c89] : memref<95xf32, #tpu.memory_space<smem>>
    %c90 = arith.constant 90 : index
    %90 = memref.load %arg2[%c90] : memref<95xf32, #tpu.memory_space<smem>>
    %c91 = arith.constant 91 : index
    %91 = memref.load %arg2[%c91] : memref<95xf32, #tpu.memory_space<smem>>
    %c92 = arith.constant 92 : index
    %92 = memref.load %arg2[%c92] : memref<95xf32, #tpu.memory_space<smem>>
    %c93 = arith.constant 93 : index
    %93 = memref.load %arg2[%c93] : memref<95xf32, #tpu.memory_space<smem>>
    %c94 = arith.constant 94 : index
    %94 = memref.load %arg2[%c94] : memref<95xf32, #tpu.memory_space<smem>>
    %c0_0 = arith.constant 0 : index
    %c0_1 = arith.constant 0 : index
    %c0_2 = arith.constant 0 : index
    %c0_3 = arith.constant 0 : index
    %95 = vector.load %arg3[%c0_0, %c0_1, %c0_2, %c0_3] : memref<1x4x8x128xf32, #tpu.memory_space<vmem>>, vector<1x1x8x128xf32>
    %96 = vector.shape_cast %95 : vector<1x1x8x128xf32> to vector<8x128xf32>
    %c0_4 = arith.constant 0 : index
    %c1_5 = arith.constant 1 : index
    %c0_6 = arith.constant 0 : index
    %c0_7 = arith.constant 0 : index
    %97 = vector.load %arg3[%c0_4, %c1_5, %c0_6, %c0_7] : memref<1x4x8x128xf32, #tpu.memory_space<vmem>>, vector<1x1x8x128xf32>
    %98 = vector.shape_cast %97 : vector<1x1x8x128xf32> to vector<8x128xf32>
    %c0_8 = arith.constant 0 : index
    %c2_9 = arith.constant 2 : index
    %c0_10 = arith.constant 0 : index
    %c0_11 = arith.constant 0 : index
    %99 = vector.load %arg3[%c0_8, %c2_9, %c0_10, %c0_11] : memref<1x4x8x128xf32, #tpu.memory_space<vmem>>, vector<1x1x8x128xf32>
    %100 = vector.shape_cast %99 : vector<1x1x8x128xf32> to vector<8x128xf32>
    %c0_12 = arith.constant 0 : index
    %c3_13 = arith.constant 3 : index
    %c0_14 = arith.constant 0 : index
    %c0_15 = arith.constant 0 : index
    %101 = vector.load %arg3[%c0_12, %c3_13, %c0_14, %c0_15] : memref<1x4x8x128xf32, #tpu.memory_space<vmem>>, vector<1x1x8x128xf32>
    %102 = vector.shape_cast %101 : vector<1x1x8x128xf32> to vector<8x128xf32>
    %103 = vector.broadcast %0 : f32 to vector<8x128xf32>
    %104 = arith.mulf %96, %103 : vector<8x128xf32>
    %105 = vector.broadcast %1 : f32 to vector<8x128xf32>
    %106 = arith.mulf %98, %105 : vector<8x128xf32>
    %107 = arith.addf %104, %106 : vector<8x128xf32>
    %108 = vector.broadcast %2 : f32 to vector<8x128xf32>
    %109 = arith.mulf %100, %108 : vector<8x128xf32>
    %110 = arith.addf %107, %109 : vector<8x128xf32>
    %111 = vector.broadcast %3 : f32 to vector<8x128xf32>
    %112 = arith.mulf %102, %111 : vector<8x128xf32>
    %113 = arith.addf %110, %112 : vector<8x128xf32>
    %114 = vector.broadcast %8 : f32 to vector<8x128xf32>
    %115 = arith.addf %113, %114 : vector<8x128xf32>
    %116 = math.absf %115 : vector<8x128xf32>
    %cst = arith.constant 0.000000e+00 : f32
    %117 = vector.broadcast %cst : f32 to vector<8x128xf32>
    %118 = arith.subf %117, %116 : vector<8x128xf32>
    %119 = math.exp %118 : vector<8x128xf32>
    %120 = arith.mulf %119, %119 : vector<8x128xf32>
    %cst_16 = arith.constant 2.000000e+00 : f32
    %121 = vector.broadcast %cst_16 : f32 to vector<8x128xf32>
    %122 = arith.mulf %121, %119 : vector<8x128xf32>
    %cst_17 = arith.constant 0.000000e+00 : f32
    %123 = vector.broadcast %cst_17 : f32 to vector<8x128xf32>
    %124 = arith.cmpf oge, %115, %123 : vector<8x128xf32>
    %cst_18 = arith.constant 1.000000e+00 : f32
    %125 = vector.broadcast %cst_18 : f32 to vector<8x128xf32>
    %126 = arith.select %124, %125, %120 : vector<8x128xi1>, vector<8x128xf32>
    %127 = arith.addf %122, %126 : vector<8x128xf32>
    %cst_19 = arith.constant 2.000000e+00 : f32
    %128 = vector.broadcast %cst_19 : f32 to vector<8x128xf32>
    %129 = arith.mulf %128, %120 : vector<8x128xf32>
    %cst_20 = arith.constant 2.000000e+00 : f32
    %130 = vector.broadcast %cst_20 : f32 to vector<8x128xf32>
    %131 = arith.select %124, %129, %130 : vector<8x128xi1>, vector<8x128xf32>
    %132 = arith.addf %127, %131 : vector<8x128xf32>
    %133 = arith.mulf %115, %127 : vector<8x128xf32>
    %134 = tpu.reciprocal %132 {approx = true} : vector<8x128xf32> -> vector<8x128xf32>
    %135 = arith.mulf %132, %134 : vector<8x128xf32>
    %cst_21 = arith.constant 2.000000e+00 : f32
    %136 = vector.broadcast %cst_21 : f32 to vector<8x128xf32>
    %137 = arith.subf %136, %135 : vector<8x128xf32>
    %138 = arith.mulf %134, %137 : vector<8x128xf32>
    %139 = arith.mulf %133, %138 : vector<8x128xf32>
    %140 = vector.broadcast %4 : f32 to vector<8x128xf32>
    %141 = arith.mulf %96, %140 : vector<8x128xf32>
    %142 = vector.broadcast %5 : f32 to vector<8x128xf32>
    %143 = arith.mulf %98, %142 : vector<8x128xf32>
    %144 = arith.addf %141, %143 : vector<8x128xf32>
    %145 = vector.broadcast %6 : f32 to vector<8x128xf32>
    %146 = arith.mulf %100, %145 : vector<8x128xf32>
    %147 = arith.addf %144, %146 : vector<8x128xf32>
    %148 = vector.broadcast %7 : f32 to vector<8x128xf32>
    %149 = arith.mulf %102, %148 : vector<8x128xf32>
    %150 = arith.addf %147, %149 : vector<8x128xf32>
    %151 = vector.broadcast %9 : f32 to vector<8x128xf32>
    %152 = arith.addf %150, %151 : vector<8x128xf32>
    %153 = math.absf %152 : vector<8x128xf32>
    %cst_22 = arith.constant 0.000000e+00 : f32
    %154 = vector.broadcast %cst_22 : f32 to vector<8x128xf32>
    %155 = arith.subf %154, %153 : vector<8x128xf32>
    %156 = math.exp %155 : vector<8x128xf32>
    %157 = arith.mulf %156, %156 : vector<8x128xf32>
    %cst_23 = arith.constant 2.000000e+00 : f32
    %158 = vector.broadcast %cst_23 : f32 to vector<8x128xf32>
    %159 = arith.mulf %158, %156 : vector<8x128xf32>
    %cst_24 = arith.constant 0.000000e+00 : f32
    %160 = vector.broadcast %cst_24 : f32 to vector<8x128xf32>
    %161 = arith.cmpf oge, %152, %160 : vector<8x128xf32>
    %cst_25 = arith.constant 1.000000e+00 : f32
    %162 = vector.broadcast %cst_25 : f32 to vector<8x128xf32>
    %163 = arith.select %161, %162, %157 : vector<8x128xi1>, vector<8x128xf32>
    %164 = arith.addf %159, %163 : vector<8x128xf32>
    %cst_26 = arith.constant 2.000000e+00 : f32
    %165 = vector.broadcast %cst_26 : f32 to vector<8x128xf32>
    %166 = arith.mulf %165, %157 : vector<8x128xf32>
    %cst_27 = arith.constant 2.000000e+00 : f32
    %167 = vector.broadcast %cst_27 : f32 to vector<8x128xf32>
    %168 = arith.select %161, %166, %167 : vector<8x128xi1>, vector<8x128xf32>
    %169 = arith.addf %164, %168 : vector<8x128xf32>
    %170 = arith.mulf %152, %164 : vector<8x128xf32>
    %171 = tpu.reciprocal %169 {approx = true} : vector<8x128xf32> -> vector<8x128xf32>
    %172 = arith.mulf %169, %171 : vector<8x128xf32>
    %cst_28 = arith.constant 2.000000e+00 : f32
    %173 = vector.broadcast %cst_28 : f32 to vector<8x128xf32>
    %174 = arith.subf %173, %172 : vector<8x128xf32>
    %175 = arith.mulf %171, %174 : vector<8x128xf32>
    %176 = arith.mulf %170, %175 : vector<8x128xf32>
    %177 = vector.broadcast %10 : f32 to vector<8x128xf32>
    %178 = arith.mulf %96, %177 : vector<8x128xf32>
    %179 = vector.broadcast %11 : f32 to vector<8x128xf32>
    %180 = arith.mulf %98, %179 : vector<8x128xf32>
    %181 = arith.addf %178, %180 : vector<8x128xf32>
    %182 = vector.broadcast %12 : f32 to vector<8x128xf32>
    %183 = arith.mulf %100, %182 : vector<8x128xf32>
    %184 = arith.addf %181, %183 : vector<8x128xf32>
    %185 = vector.broadcast %13 : f32 to vector<8x128xf32>
    %186 = arith.mulf %102, %185 : vector<8x128xf32>
    %187 = arith.addf %184, %186 : vector<8x128xf32>
    %188 = vector.broadcast %18 : f32 to vector<8x128xf32>
    %189 = arith.addf %187, %188 : vector<8x128xf32>
    %190 = math.absf %189 : vector<8x128xf32>
    %cst_29 = arith.constant 0.000000e+00 : f32
    %191 = vector.broadcast %cst_29 : f32 to vector<8x128xf32>
    %192 = arith.subf %191, %190 : vector<8x128xf32>
    %193 = math.exp %192 : vector<8x128xf32>
    %194 = arith.mulf %193, %193 : vector<8x128xf32>
    %cst_30 = arith.constant 2.000000e+00 : f32
    %195 = vector.broadcast %cst_30 : f32 to vector<8x128xf32>
    %196 = arith.mulf %195, %193 : vector<8x128xf32>
    %cst_31 = arith.constant 0.000000e+00 : f32
    %197 = vector.broadcast %cst_31 : f32 to vector<8x128xf32>
    %198 = arith.cmpf oge, %189, %197 : vector<8x128xf32>
    %cst_32 = arith.constant 1.000000e+00 : f32
    %199 = vector.broadcast %cst_32 : f32 to vector<8x128xf32>
    %200 = arith.select %198, %199, %194 : vector<8x128xi1>, vector<8x128xf32>
    %201 = arith.addf %196, %200 : vector<8x128xf32>
    %cst_33 = arith.constant 2.000000e+00 : f32
    %202 = vector.broadcast %cst_33 : f32 to vector<8x128xf32>
    %203 = arith.mulf %202, %194 : vector<8x128xf32>
    %cst_34 = arith.constant 2.000000e+00 : f32
    %204 = vector.broadcast %cst_34 : f32 to vector<8x128xf32>
    %205 = arith.select %198, %203, %204 : vector<8x128xi1>, vector<8x128xf32>
    %206 = arith.addf %201, %205 : vector<8x128xf32>
    %207 = arith.mulf %189, %201 : vector<8x128xf32>
    %208 = tpu.reciprocal %206 {approx = true} : vector<8x128xf32> -> vector<8x128xf32>
    %209 = arith.mulf %206, %208 : vector<8x128xf32>
    %cst_35 = arith.constant 2.000000e+00 : f32
    %210 = vector.broadcast %cst_35 : f32 to vector<8x128xf32>
    %211 = arith.subf %210, %209 : vector<8x128xf32>
    %212 = arith.mulf %208, %211 : vector<8x128xf32>
    %213 = arith.mulf %207, %212 : vector<8x128xf32>
    %214 = vector.broadcast %14 : f32 to vector<8x128xf32>
    %215 = arith.mulf %96, %214 : vector<8x128xf32>
    %216 = vector.broadcast %15 : f32 to vector<8x128xf32>
    %217 = arith.mulf %98, %216 : vector<8x128xf32>
    %218 = arith.addf %215, %217 : vector<8x128xf32>
    %219 = vector.broadcast %16 : f32 to vector<8x128xf32>
    %220 = arith.mulf %100, %219 : vector<8x128xf32>
    %221 = arith.addf %218, %220 : vector<8x128xf32>
    %222 = vector.broadcast %17 : f32 to vector<8x128xf32>
    %223 = arith.mulf %102, %222 : vector<8x128xf32>
    %224 = arith.addf %221, %223 : vector<8x128xf32>
    %225 = vector.broadcast %19 : f32 to vector<8x128xf32>
    %226 = arith.addf %224, %225 : vector<8x128xf32>
    %227 = math.absf %226 : vector<8x128xf32>
    %cst_36 = arith.constant 0.000000e+00 : f32
    %228 = vector.broadcast %cst_36 : f32 to vector<8x128xf32>
    %229 = arith.subf %228, %227 : vector<8x128xf32>
    %230 = math.exp %229 : vector<8x128xf32>
    %231 = arith.mulf %230, %230 : vector<8x128xf32>
    %cst_37 = arith.constant 2.000000e+00 : f32
    %232 = vector.broadcast %cst_37 : f32 to vector<8x128xf32>
    %233 = arith.mulf %232, %230 : vector<8x128xf32>
    %cst_38 = arith.constant 0.000000e+00 : f32
    %234 = vector.broadcast %cst_38 : f32 to vector<8x128xf32>
    %235 = arith.cmpf oge, %226, %234 : vector<8x128xf32>
    %cst_39 = arith.constant 1.000000e+00 : f32
    %236 = vector.broadcast %cst_39 : f32 to vector<8x128xf32>
    %237 = arith.select %235, %236, %231 : vector<8x128xi1>, vector<8x128xf32>
    %238 = arith.addf %233, %237 : vector<8x128xf32>
    %cst_40 = arith.constant 2.000000e+00 : f32
    %239 = vector.broadcast %cst_40 : f32 to vector<8x128xf32>
    %240 = arith.mulf %239, %231 : vector<8x128xf32>
    %cst_41 = arith.constant 2.000000e+00 : f32
    %241 = vector.broadcast %cst_41 : f32 to vector<8x128xf32>
    %242 = arith.select %235, %240, %241 : vector<8x128xi1>, vector<8x128xf32>
    %243 = arith.addf %238, %242 : vector<8x128xf32>
    %244 = arith.mulf %226, %238 : vector<8x128xf32>
    %245 = tpu.reciprocal %243 {approx = true} : vector<8x128xf32> -> vector<8x128xf32>
    %246 = arith.mulf %243, %245 : vector<8x128xf32>
    %cst_42 = arith.constant 2.000000e+00 : f32
    %247 = vector.broadcast %cst_42 : f32 to vector<8x128xf32>
    %248 = arith.subf %247, %246 : vector<8x128xf32>
    %249 = arith.mulf %245, %248 : vector<8x128xf32>
    %250 = arith.mulf %244, %249 : vector<8x128xf32>
    %251 = vector.broadcast %20 : f32 to vector<8x128xf32>
    %252 = arith.mulf %96, %251 : vector<8x128xf32>
    %253 = vector.broadcast %21 : f32 to vector<8x128xf32>
    %254 = arith.mulf %98, %253 : vector<8x128xf32>
    %255 = arith.addf %252, %254 : vector<8x128xf32>
    %256 = vector.broadcast %22 : f32 to vector<8x128xf32>
    %257 = arith.mulf %100, %256 : vector<8x128xf32>
    %258 = arith.addf %255, %257 : vector<8x128xf32>
    %259 = vector.broadcast %23 : f32 to vector<8x128xf32>
    %260 = arith.mulf %102, %259 : vector<8x128xf32>
    %261 = arith.addf %258, %260 : vector<8x128xf32>
    %262 = vector.broadcast %28 : f32 to vector<8x128xf32>
    %263 = arith.addf %261, %262 : vector<8x128xf32>
    %264 = math.absf %263 : vector<8x128xf32>
    %cst_43 = arith.constant 0.000000e+00 : f32
    %265 = vector.broadcast %cst_43 : f32 to vector<8x128xf32>
    %266 = arith.subf %265, %264 : vector<8x128xf32>
    %267 = math.exp %266 : vector<8x128xf32>
    %268 = arith.mulf %267, %267 : vector<8x128xf32>
    %cst_44 = arith.constant 2.000000e+00 : f32
    %269 = vector.broadcast %cst_44 : f32 to vector<8x128xf32>
    %270 = arith.mulf %269, %267 : vector<8x128xf32>
    %cst_45 = arith.constant 0.000000e+00 : f32
    %271 = vector.broadcast %cst_45 : f32 to vector<8x128xf32>
    %272 = arith.cmpf oge, %263, %271 : vector<8x128xf32>
    %cst_46 = arith.constant 1.000000e+00 : f32
    %273 = vector.broadcast %cst_46 : f32 to vector<8x128xf32>
    %274 = arith.select %272, %273, %268 : vector<8x128xi1>, vector<8x128xf32>
    %275 = arith.addf %270, %274 : vector<8x128xf32>
    %cst_47 = arith.constant 2.000000e+00 : f32
    %276 = vector.broadcast %cst_47 : f32 to vector<8x128xf32>
    %277 = arith.mulf %276, %268 : vector<8x128xf32>
    %cst_48 = arith.constant 2.000000e+00 : f32
    %278 = vector.broadcast %cst_48 : f32 to vector<8x128xf32>
    %279 = arith.select %272, %277, %278 : vector<8x128xi1>, vector<8x128xf32>
    %280 = arith.addf %275, %279 : vector<8x128xf32>
    %281 = arith.mulf %263, %275 : vector<8x128xf32>
    %282 = tpu.reciprocal %280 {approx = true} : vector<8x128xf32> -> vector<8x128xf32>
    %283 = arith.mulf %280, %282 : vector<8x128xf32>
    %cst_49 = arith.constant 2.000000e+00 : f32
    %284 = vector.broadcast %cst_49 : f32 to vector<8x128xf32>
    %285 = arith.subf %284, %283 : vector<8x128xf32>
    %286 = arith.mulf %282, %285 : vector<8x128xf32>
    %287 = arith.mulf %281, %286 : vector<8x128xf32>
    %288 = vector.broadcast %24 : f32 to vector<8x128xf32>
    %289 = arith.mulf %96, %288 : vector<8x128xf32>
    %290 = vector.broadcast %25 : f32 to vector<8x128xf32>
    %291 = arith.mulf %98, %290 : vector<8x128xf32>
    %292 = arith.addf %289, %291 : vector<8x128xf32>
    %293 = vector.broadcast %26 : f32 to vector<8x128xf32>
    %294 = arith.mulf %100, %293 : vector<8x128xf32>
    %295 = arith.addf %292, %294 : vector<8x128xf32>
    %296 = vector.broadcast %27 : f32 to vector<8x128xf32>
    %297 = arith.mulf %102, %296 : vector<8x128xf32>
    %298 = arith.addf %295, %297 : vector<8x128xf32>
    %299 = vector.broadcast %29 : f32 to vector<8x128xf32>
    %300 = arith.addf %298, %299 : vector<8x128xf32>
    %301 = math.absf %300 : vector<8x128xf32>
    %cst_50 = arith.constant 0.000000e+00 : f32
    %302 = vector.broadcast %cst_50 : f32 to vector<8x128xf32>
    %303 = arith.subf %302, %301 : vector<8x128xf32>
    %304 = math.exp %303 : vector<8x128xf32>
    %305 = arith.mulf %304, %304 : vector<8x128xf32>
    %cst_51 = arith.constant 2.000000e+00 : f32
    %306 = vector.broadcast %cst_51 : f32 to vector<8x128xf32>
    %307 = arith.mulf %306, %304 : vector<8x128xf32>
    %cst_52 = arith.constant 0.000000e+00 : f32
    %308 = vector.broadcast %cst_52 : f32 to vector<8x128xf32>
    %309 = arith.cmpf oge, %300, %308 : vector<8x128xf32>
    %cst_53 = arith.constant 1.000000e+00 : f32
    %310 = vector.broadcast %cst_53 : f32 to vector<8x128xf32>
    %311 = arith.select %309, %310, %305 : vector<8x128xi1>, vector<8x128xf32>
    %312 = arith.addf %307, %311 : vector<8x128xf32>
    %cst_54 = arith.constant 2.000000e+00 : f32
    %313 = vector.broadcast %cst_54 : f32 to vector<8x128xf32>
    %314 = arith.mulf %313, %305 : vector<8x128xf32>
    %cst_55 = arith.constant 2.000000e+00 : f32
    %315 = vector.broadcast %cst_55 : f32 to vector<8x128xf32>
    %316 = arith.select %309, %314, %315 : vector<8x128xi1>, vector<8x128xf32>
    %317 = arith.addf %312, %316 : vector<8x128xf32>
    %318 = arith.mulf %300, %312 : vector<8x128xf32>
    %319 = tpu.reciprocal %317 {approx = true} : vector<8x128xf32> -> vector<8x128xf32>
    %320 = arith.mulf %317, %319 : vector<8x128xf32>
    %cst_56 = arith.constant 2.000000e+00 : f32
    %321 = vector.broadcast %cst_56 : f32 to vector<8x128xf32>
    %322 = arith.subf %321, %320 : vector<8x128xf32>
    %323 = arith.mulf %319, %322 : vector<8x128xf32>
    %324 = arith.mulf %318, %323 : vector<8x128xf32>
    %325 = vector.broadcast %30 : f32 to vector<8x128xf32>
    %326 = arith.mulf %139, %325 : vector<8x128xf32>
    %327 = vector.broadcast %31 : f32 to vector<8x128xf32>
    %328 = arith.mulf %176, %327 : vector<8x128xf32>
    %329 = arith.addf %326, %328 : vector<8x128xf32>
    %330 = vector.broadcast %32 : f32 to vector<8x128xf32>
    %331 = arith.mulf %213, %330 : vector<8x128xf32>
    %332 = arith.addf %329, %331 : vector<8x128xf32>
    %333 = vector.broadcast %33 : f32 to vector<8x128xf32>
    %334 = arith.mulf %250, %333 : vector<8x128xf32>
    %335 = arith.addf %332, %334 : vector<8x128xf32>
    %336 = vector.broadcast %34 : f32 to vector<8x128xf32>
    %337 = arith.addf %335, %336 : vector<8x128xf32>
    %338 = math.absf %337 : vector<8x128xf32>
    %cst_57 = arith.constant 0.000000e+00 : f32
    %339 = vector.broadcast %cst_57 : f32 to vector<8x128xf32>
    %340 = arith.subf %339, %338 : vector<8x128xf32>
    %341 = math.exp %340 : vector<8x128xf32>
    %342 = arith.mulf %341, %341 : vector<8x128xf32>
    %cst_58 = arith.constant 2.000000e+00 : f32
    %343 = vector.broadcast %cst_58 : f32 to vector<8x128xf32>
    %344 = arith.mulf %343, %341 : vector<8x128xf32>
    %cst_59 = arith.constant 0.000000e+00 : f32
    %345 = vector.broadcast %cst_59 : f32 to vector<8x128xf32>
    %346 = arith.cmpf oge, %337, %345 : vector<8x128xf32>
    %cst_60 = arith.constant 1.000000e+00 : f32
    %347 = vector.broadcast %cst_60 : f32 to vector<8x128xf32>
    %348 = arith.select %346, %347, %342 : vector<8x128xi1>, vector<8x128xf32>
    %349 = arith.addf %344, %348 : vector<8x128xf32>
    %cst_61 = arith.constant 2.000000e+00 : f32
    %350 = vector.broadcast %cst_61 : f32 to vector<8x128xf32>
    %351 = arith.mulf %350, %342 : vector<8x128xf32>
    %cst_62 = arith.constant 2.000000e+00 : f32
    %352 = vector.broadcast %cst_62 : f32 to vector<8x128xf32>
    %353 = arith.select %346, %351, %352 : vector<8x128xi1>, vector<8x128xf32>
    %354 = arith.addf %349, %353 : vector<8x128xf32>
    %355 = arith.mulf %337, %349 : vector<8x128xf32>
    %356 = tpu.reciprocal %354 {approx = true} : vector<8x128xf32> -> vector<8x128xf32>
    %357 = arith.mulf %354, %356 : vector<8x128xf32>
    %cst_63 = arith.constant 2.000000e+00 : f32
    %358 = vector.broadcast %cst_63 : f32 to vector<8x128xf32>
    %359 = arith.subf %358, %357 : vector<8x128xf32>
    %360 = arith.mulf %356, %359 : vector<8x128xf32>
    %361 = arith.mulf %355, %360 : vector<8x128xf32>
    %362 = vector.broadcast %35 : f32 to vector<8x128xf32>
    %363 = arith.mulf %361, %362 : vector<8x128xf32>
    %364 = vector.broadcast %36 : f32 to vector<8x128xf32>
    %365 = arith.addf %363, %364 : vector<8x128xf32>
    %366 = math.absf %365 : vector<8x128xf32>
    %cst_64 = arith.constant 0.000000e+00 : f32
    %367 = vector.broadcast %cst_64 : f32 to vector<8x128xf32>
    %368 = arith.subf %367, %366 : vector<8x128xf32>
    %369 = math.exp %368 : vector<8x128xf32>
    %370 = arith.mulf %369, %369 : vector<8x128xf32>
    %cst_65 = arith.constant 2.000000e+00 : f32
    %371 = vector.broadcast %cst_65 : f32 to vector<8x128xf32>
    %372 = arith.mulf %371, %369 : vector<8x128xf32>
    %cst_66 = arith.constant 0.000000e+00 : f32
    %373 = vector.broadcast %cst_66 : f32 to vector<8x128xf32>
    %374 = arith.cmpf oge, %365, %373 : vector<8x128xf32>
    %cst_67 = arith.constant 1.000000e+00 : f32
    %375 = vector.broadcast %cst_67 : f32 to vector<8x128xf32>
    %376 = arith.select %374, %375, %370 : vector<8x128xi1>, vector<8x128xf32>
    %377 = arith.addf %372, %376 : vector<8x128xf32>
    %cst_68 = arith.constant 2.000000e+00 : f32
    %378 = vector.broadcast %cst_68 : f32 to vector<8x128xf32>
    %379 = arith.mulf %378, %370 : vector<8x128xf32>
    %cst_69 = arith.constant 2.000000e+00 : f32
    %380 = vector.broadcast %cst_69 : f32 to vector<8x128xf32>
    %381 = arith.select %374, %379, %380 : vector<8x128xi1>, vector<8x128xf32>
    %382 = arith.addf %377, %381 : vector<8x128xf32>
    %383 = arith.mulf %365, %377 : vector<8x128xf32>
    %384 = tpu.reciprocal %382 {approx = true} : vector<8x128xf32> -> vector<8x128xf32>
    %385 = arith.mulf %382, %384 : vector<8x128xf32>
    %cst_70 = arith.constant 2.000000e+00 : f32
    %386 = vector.broadcast %cst_70 : f32 to vector<8x128xf32>
    %387 = arith.subf %386, %385 : vector<8x128xf32>
    %388 = arith.mulf %384, %387 : vector<8x128xf32>
    %389 = arith.mulf %383, %388 : vector<8x128xf32>
    %390 = vector.broadcast %37 : f32 to vector<8x128xf32>
    %391 = arith.mulf %389, %390 : vector<8x128xf32>
    %392 = vector.broadcast %38 : f32 to vector<8x128xf32>
    %393 = arith.addf %391, %392 : vector<8x128xf32>
    %394 = arith.addf %393, %361 : vector<8x128xf32>
    %395 = vector.broadcast %39 : f32 to vector<8x128xf32>
    %396 = arith.mulf %394, %395 : vector<8x128xf32>
    %397 = vector.broadcast %40 : f32 to vector<8x128xf32>
    %398 = arith.mulf %287, %397 : vector<8x128xf32>
    %399 = arith.addf %396, %398 : vector<8x128xf32>
    %400 = vector.broadcast %41 : f32 to vector<8x128xf32>
    %401 = arith.mulf %324, %400 : vector<8x128xf32>
    %402 = arith.addf %399, %401 : vector<8x128xf32>
    %403 = vector.broadcast %51 : f32 to vector<8x128xf32>
    %404 = arith.addf %402, %403 : vector<8x128xf32>
    %405 = math.absf %404 : vector<8x128xf32>
    %cst_71 = arith.constant 0.000000e+00 : f32
    %406 = vector.broadcast %cst_71 : f32 to vector<8x128xf32>
    %407 = arith.subf %406, %405 : vector<8x128xf32>
    %408 = math.exp %407 : vector<8x128xf32>
    %409 = arith.mulf %408, %408 : vector<8x128xf32>
    %cst_72 = arith.constant 2.000000e+00 : f32
    %410 = vector.broadcast %cst_72 : f32 to vector<8x128xf32>
    %411 = arith.mulf %410, %408 : vector<8x128xf32>
    %cst_73 = arith.constant 0.000000e+00 : f32
    %412 = vector.broadcast %cst_73 : f32 to vector<8x128xf32>
    %413 = arith.cmpf oge, %404, %412 : vector<8x128xf32>
    %cst_74 = arith.constant 1.000000e+00 : f32
    %414 = vector.broadcast %cst_74 : f32 to vector<8x128xf32>
    %415 = arith.select %413, %414, %409 : vector<8x128xi1>, vector<8x128xf32>
    %416 = arith.addf %411, %415 : vector<8x128xf32>
    %cst_75 = arith.constant 2.000000e+00 : f32
    %417 = vector.broadcast %cst_75 : f32 to vector<8x128xf32>
    %418 = arith.mulf %417, %409 : vector<8x128xf32>
    %cst_76 = arith.constant 2.000000e+00 : f32
    %419 = vector.broadcast %cst_76 : f32 to vector<8x128xf32>
    %420 = arith.select %413, %418, %419 : vector<8x128xi1>, vector<8x128xf32>
    %421 = arith.addf %416, %420 : vector<8x128xf32>
    %422 = arith.mulf %404, %416 : vector<8x128xf32>
    %423 = tpu.reciprocal %421 {approx = true} : vector<8x128xf32> -> vector<8x128xf32>
    %424 = arith.mulf %421, %423 : vector<8x128xf32>
    %cst_77 = arith.constant 2.000000e+00 : f32
    %425 = vector.broadcast %cst_77 : f32 to vector<8x128xf32>
    %426 = arith.subf %425, %424 : vector<8x128xf32>
    %427 = arith.mulf %423, %426 : vector<8x128xf32>
    %428 = arith.mulf %422, %427 : vector<8x128xf32>
    %429 = vector.broadcast %42 : f32 to vector<8x128xf32>
    %430 = arith.mulf %394, %429 : vector<8x128xf32>
    %431 = vector.broadcast %43 : f32 to vector<8x128xf32>
    %432 = arith.mulf %287, %431 : vector<8x128xf32>
    %433 = arith.addf %430, %432 : vector<8x128xf32>
    %434 = vector.broadcast %44 : f32 to vector<8x128xf32>
    %435 = arith.mulf %324, %434 : vector<8x128xf32>
    %436 = arith.addf %433, %435 : vector<8x128xf32>
    %437 = vector.broadcast %52 : f32 to vector<8x128xf32>
    %438 = arith.addf %436, %437 : vector<8x128xf32>
    %439 = math.absf %438 : vector<8x128xf32>
    %cst_78 = arith.constant 0.000000e+00 : f32
    %440 = vector.broadcast %cst_78 : f32 to vector<8x128xf32>
    %441 = arith.subf %440, %439 : vector<8x128xf32>
    %442 = math.exp %441 : vector<8x128xf32>
    %443 = arith.mulf %442, %442 : vector<8x128xf32>
    %cst_79 = arith.constant 2.000000e+00 : f32
    %444 = vector.broadcast %cst_79 : f32 to vector<8x128xf32>
    %445 = arith.mulf %444, %442 : vector<8x128xf32>
    %cst_80 = arith.constant 0.000000e+00 : f32
    %446 = vector.broadcast %cst_80 : f32 to vector<8x128xf32>
    %447 = arith.cmpf oge, %438, %446 : vector<8x128xf32>
    %cst_81 = arith.constant 1.000000e+00 : f32
    %448 = vector.broadcast %cst_81 : f32 to vector<8x128xf32>
    %449 = arith.select %447, %448, %443 : vector<8x128xi1>, vector<8x128xf32>
    %450 = arith.addf %445, %449 : vector<8x128xf32>
    %cst_82 = arith.constant 2.000000e+00 : f32
    %451 = vector.broadcast %cst_82 : f32 to vector<8x128xf32>
    %452 = arith.mulf %451, %443 : vector<8x128xf32>
    %cst_83 = arith.constant 2.000000e+00 : f32
    %453 = vector.broadcast %cst_83 : f32 to vector<8x128xf32>
    %454 = arith.select %447, %452, %453 : vector<8x128xi1>, vector<8x128xf32>
    %455 = arith.addf %450, %454 : vector<8x128xf32>
    %456 = arith.mulf %438, %450 : vector<8x128xf32>
    %457 = tpu.reciprocal %455 {approx = true} : vector<8x128xf32> -> vector<8x128xf32>
    %458 = arith.mulf %455, %457 : vector<8x128xf32>
    %cst_84 = arith.constant 2.000000e+00 : f32
    %459 = vector.broadcast %cst_84 : f32 to vector<8x128xf32>
    %460 = arith.subf %459, %458 : vector<8x128xf32>
    %461 = arith.mulf %457, %460 : vector<8x128xf32>
    %462 = arith.mulf %456, %461 : vector<8x128xf32>
    %463 = vector.broadcast %45 : f32 to vector<8x128xf32>
    %464 = arith.mulf %394, %463 : vector<8x128xf32>
    %465 = vector.broadcast %46 : f32 to vector<8x128xf32>
    %466 = arith.mulf %287, %465 : vector<8x128xf32>
    %467 = arith.addf %464, %466 : vector<8x128xf32>
    %468 = vector.broadcast %47 : f32 to vector<8x128xf32>
    %469 = arith.mulf %324, %468 : vector<8x128xf32>
    %470 = arith.addf %467, %469 : vector<8x128xf32>
    %471 = vector.broadcast %53 : f32 to vector<8x128xf32>
    %472 = arith.addf %470, %471 : vector<8x128xf32>
    %473 = math.absf %472 : vector<8x128xf32>
    %cst_85 = arith.constant 0.000000e+00 : f32
    %474 = vector.broadcast %cst_85 : f32 to vector<8x128xf32>
    %475 = arith.subf %474, %473 : vector<8x128xf32>
    %476 = math.exp %475 : vector<8x128xf32>
    %477 = arith.mulf %476, %476 : vector<8x128xf32>
    %cst_86 = arith.constant 2.000000e+00 : f32
    %478 = vector.broadcast %cst_86 : f32 to vector<8x128xf32>
    %479 = arith.mulf %478, %476 : vector<8x128xf32>
    %cst_87 = arith.constant 0.000000e+00 : f32
    %480 = vector.broadcast %cst_87 : f32 to vector<8x128xf32>
    %481 = arith.cmpf oge, %472, %480 : vector<8x128xf32>
    %cst_88 = arith.constant 1.000000e+00 : f32
    %482 = vector.broadcast %cst_88 : f32 to vector<8x128xf32>
    %483 = arith.select %481, %482, %477 : vector<8x128xi1>, vector<8x128xf32>
    %484 = arith.addf %479, %483 : vector<8x128xf32>
    %cst_89 = arith.constant 2.000000e+00 : f32
    %485 = vector.broadcast %cst_89 : f32 to vector<8x128xf32>
    %486 = arith.mulf %485, %477 : vector<8x128xf32>
    %cst_90 = arith.constant 2.000000e+00 : f32
    %487 = vector.broadcast %cst_90 : f32 to vector<8x128xf32>
    %488 = arith.select %481, %486, %487 : vector<8x128xi1>, vector<8x128xf32>
    %489 = arith.addf %484, %488 : vector<8x128xf32>
    %490 = arith.mulf %472, %484 : vector<8x128xf32>
    %491 = tpu.reciprocal %489 {approx = true} : vector<8x128xf32> -> vector<8x128xf32>
    %492 = arith.mulf %489, %491 : vector<8x128xf32>
    %cst_91 = arith.constant 2.000000e+00 : f32
    %493 = vector.broadcast %cst_91 : f32 to vector<8x128xf32>
    %494 = arith.subf %493, %492 : vector<8x128xf32>
    %495 = arith.mulf %491, %494 : vector<8x128xf32>
    %496 = arith.mulf %490, %495 : vector<8x128xf32>
    %497 = vector.broadcast %48 : f32 to vector<8x128xf32>
    %498 = arith.mulf %394, %497 : vector<8x128xf32>
    %499 = vector.broadcast %49 : f32 to vector<8x128xf32>
    %500 = arith.mulf %287, %499 : vector<8x128xf32>
    %501 = arith.addf %498, %500 : vector<8x128xf32>
    %502 = vector.broadcast %50 : f32 to vector<8x128xf32>
    %503 = arith.mulf %324, %502 : vector<8x128xf32>
    %504 = arith.addf %501, %503 : vector<8x128xf32>
    %505 = vector.broadcast %54 : f32 to vector<8x128xf32>
    %506 = arith.addf %504, %505 : vector<8x128xf32>
    %507 = math.absf %506 : vector<8x128xf32>
    %cst_92 = arith.constant 0.000000e+00 : f32
    %508 = vector.broadcast %cst_92 : f32 to vector<8x128xf32>
    %509 = arith.subf %508, %507 : vector<8x128xf32>
    %510 = math.exp %509 : vector<8x128xf32>
    %511 = arith.mulf %510, %510 : vector<8x128xf32>
    %cst_93 = arith.constant 2.000000e+00 : f32
    %512 = vector.broadcast %cst_93 : f32 to vector<8x128xf32>
    %513 = arith.mulf %512, %510 : vector<8x128xf32>
    %cst_94 = arith.constant 0.000000e+00 : f32
    %514 = vector.broadcast %cst_94 : f32 to vector<8x128xf32>
    %515 = arith.cmpf oge, %506, %514 : vector<8x128xf32>
    %cst_95 = arith.constant 1.000000e+00 : f32
    %516 = vector.broadcast %cst_95 : f32 to vector<8x128xf32>
    %517 = arith.select %515, %516, %511 : vector<8x128xi1>, vector<8x128xf32>
    %518 = arith.addf %513, %517 : vector<8x128xf32>
    %cst_96 = arith.constant 2.000000e+00 : f32
    %519 = vector.broadcast %cst_96 : f32 to vector<8x128xf32>
    %520 = arith.mulf %519, %511 : vector<8x128xf32>
    %cst_97 = arith.constant 2.000000e+00 : f32
    %521 = vector.broadcast %cst_97 : f32 to vector<8x128xf32>
    %522 = arith.select %515, %520, %521 : vector<8x128xi1>, vector<8x128xf32>
    %523 = arith.addf %518, %522 : vector<8x128xf32>
    %524 = arith.mulf %506, %518 : vector<8x128xf32>
    %525 = tpu.reciprocal %523 {approx = true} : vector<8x128xf32> -> vector<8x128xf32>
    %526 = arith.mulf %523, %525 : vector<8x128xf32>
    %cst_98 = arith.constant 2.000000e+00 : f32
    %527 = vector.broadcast %cst_98 : f32 to vector<8x128xf32>
    %528 = arith.subf %527, %526 : vector<8x128xf32>
    %529 = arith.mulf %525, %528 : vector<8x128xf32>
    %530 = arith.mulf %524, %529 : vector<8x128xf32>
    %531 = vector.broadcast %55 : f32 to vector<8x128xf32>
    %532 = arith.mulf %428, %531 : vector<8x128xf32>
    %533 = vector.broadcast %56 : f32 to vector<8x128xf32>
    %534 = arith.mulf %462, %533 : vector<8x128xf32>
    %535 = arith.addf %532, %534 : vector<8x128xf32>
    %536 = vector.broadcast %57 : f32 to vector<8x128xf32>
    %537 = arith.mulf %496, %536 : vector<8x128xf32>
    %538 = arith.addf %535, %537 : vector<8x128xf32>
    %539 = vector.broadcast %58 : f32 to vector<8x128xf32>
    %540 = arith.mulf %530, %539 : vector<8x128xf32>
    %541 = arith.addf %538, %540 : vector<8x128xf32>
    %542 = vector.broadcast %71 : f32 to vector<8x128xf32>
    %543 = arith.addf %541, %542 : vector<8x128xf32>
    %544 = math.absf %543 : vector<8x128xf32>
    %cst_99 = arith.constant 0.000000e+00 : f32
    %545 = vector.broadcast %cst_99 : f32 to vector<8x128xf32>
    %546 = arith.subf %545, %544 : vector<8x128xf32>
    %547 = math.exp %546 : vector<8x128xf32>
    %548 = arith.mulf %547, %547 : vector<8x128xf32>
    %cst_100 = arith.constant 2.000000e+00 : f32
    %549 = vector.broadcast %cst_100 : f32 to vector<8x128xf32>
    %550 = arith.mulf %549, %547 : vector<8x128xf32>
    %cst_101 = arith.constant 0.000000e+00 : f32
    %551 = vector.broadcast %cst_101 : f32 to vector<8x128xf32>
    %552 = arith.cmpf oge, %543, %551 : vector<8x128xf32>
    %cst_102 = arith.constant 1.000000e+00 : f32
    %553 = vector.broadcast %cst_102 : f32 to vector<8x128xf32>
    %554 = arith.select %552, %553, %548 : vector<8x128xi1>, vector<8x128xf32>
    %555 = arith.addf %550, %554 : vector<8x128xf32>
    %cst_103 = arith.constant 2.000000e+00 : f32
    %556 = vector.broadcast %cst_103 : f32 to vector<8x128xf32>
    %557 = arith.mulf %556, %548 : vector<8x128xf32>
    %cst_104 = arith.constant 2.000000e+00 : f32
    %558 = vector.broadcast %cst_104 : f32 to vector<8x128xf32>
    %559 = arith.select %552, %557, %558 : vector<8x128xi1>, vector<8x128xf32>
    %560 = arith.addf %555, %559 : vector<8x128xf32>
    %561 = arith.mulf %543, %555 : vector<8x128xf32>
    %562 = tpu.reciprocal %560 {approx = true} : vector<8x128xf32> -> vector<8x128xf32>
    %563 = arith.mulf %560, %562 : vector<8x128xf32>
    %cst_105 = arith.constant 2.000000e+00 : f32
    %564 = vector.broadcast %cst_105 : f32 to vector<8x128xf32>
    %565 = arith.subf %564, %563 : vector<8x128xf32>
    %566 = arith.mulf %562, %565 : vector<8x128xf32>
    %567 = arith.mulf %561, %566 : vector<8x128xf32>
    %568 = vector.broadcast %59 : f32 to vector<8x128xf32>
    %569 = arith.mulf %428, %568 : vector<8x128xf32>
    %570 = vector.broadcast %60 : f32 to vector<8x128xf32>
    %571 = arith.mulf %462, %570 : vector<8x128xf32>
    %572 = arith.addf %569, %571 : vector<8x128xf32>
    %573 = vector.broadcast %61 : f32 to vector<8x128xf32>
    %574 = arith.mulf %496, %573 : vector<8x128xf32>
    %575 = arith.addf %572, %574 : vector<8x128xf32>
    %576 = vector.broadcast %62 : f32 to vector<8x128xf32>
    %577 = arith.mulf %530, %576 : vector<8x128xf32>
    %578 = arith.addf %575, %577 : vector<8x128xf32>
    %579 = vector.broadcast %72 : f32 to vector<8x128xf32>
    %580 = arith.addf %578, %579 : vector<8x128xf32>
    %581 = math.absf %580 : vector<8x128xf32>
    %cst_106 = arith.constant 0.000000e+00 : f32
    %582 = vector.broadcast %cst_106 : f32 to vector<8x128xf32>
    %583 = arith.subf %582, %581 : vector<8x128xf32>
    %584 = math.exp %583 : vector<8x128xf32>
    %585 = arith.mulf %584, %584 : vector<8x128xf32>
    %cst_107 = arith.constant 2.000000e+00 : f32
    %586 = vector.broadcast %cst_107 : f32 to vector<8x128xf32>
    %587 = arith.mulf %586, %584 : vector<8x128xf32>
    %cst_108 = arith.constant 0.000000e+00 : f32
    %588 = vector.broadcast %cst_108 : f32 to vector<8x128xf32>
    %589 = arith.cmpf oge, %580, %588 : vector<8x128xf32>
    %cst_109 = arith.constant 1.000000e+00 : f32
    %590 = vector.broadcast %cst_109 : f32 to vector<8x128xf32>
    %591 = arith.select %589, %590, %585 : vector<8x128xi1>, vector<8x128xf32>
    %592 = arith.addf %587, %591 : vector<8x128xf32>
    %cst_110 = arith.constant 2.000000e+00 : f32
    %593 = vector.broadcast %cst_110 : f32 to vector<8x128xf32>
    %594 = arith.mulf %593, %585 : vector<8x128xf32>
    %cst_111 = arith.constant 2.000000e+00 : f32
    %595 = vector.broadcast %cst_111 : f32 to vector<8x128xf32>
    %596 = arith.select %589, %594, %595 : vector<8x128xi1>, vector<8x128xf32>
    %597 = arith.addf %592, %596 : vector<8x128xf32>
    %598 = arith.mulf %580, %592 : vector<8x128xf32>
    %599 = tpu.reciprocal %597 {approx = true} : vector<8x128xf32> -> vector<8x128xf32>
    %600 = arith.mulf %597, %599 : vector<8x128xf32>
    %cst_112 = arith.constant 2.000000e+00 : f32
    %601 = vector.broadcast %cst_112 : f32 to vector<8x128xf32>
    %602 = arith.subf %601, %600 : vector<8x128xf32>
    %603 = arith.mulf %599, %602 : vector<8x128xf32>
    %604 = arith.mulf %598, %603 : vector<8x128xf32>
    %605 = vector.broadcast %63 : f32 to vector<8x128xf32>
    %606 = arith.mulf %428, %605 : vector<8x128xf32>
    %607 = vector.broadcast %64 : f32 to vector<8x128xf32>
    %608 = arith.mulf %462, %607 : vector<8x128xf32>
    %609 = arith.addf %606, %608 : vector<8x128xf32>
    %610 = vector.broadcast %65 : f32 to vector<8x128xf32>
    %611 = arith.mulf %496, %610 : vector<8x128xf32>
    %612 = arith.addf %609, %611 : vector<8x128xf32>
    %613 = vector.broadcast %66 : f32 to vector<8x128xf32>
    %614 = arith.mulf %530, %613 : vector<8x128xf32>
    %615 = arith.addf %612, %614 : vector<8x128xf32>
    %616 = vector.broadcast %73 : f32 to vector<8x128xf32>
    %617 = arith.addf %615, %616 : vector<8x128xf32>
    %618 = math.absf %617 : vector<8x128xf32>
    %cst_113 = arith.constant 0.000000e+00 : f32
    %619 = vector.broadcast %cst_113 : f32 to vector<8x128xf32>
    %620 = arith.subf %619, %618 : vector<8x128xf32>
    %621 = math.exp %620 : vector<8x128xf32>
    %622 = arith.mulf %621, %621 : vector<8x128xf32>
    %cst_114 = arith.constant 2.000000e+00 : f32
    %623 = vector.broadcast %cst_114 : f32 to vector<8x128xf32>
    %624 = arith.mulf %623, %621 : vector<8x128xf32>
    %cst_115 = arith.constant 0.000000e+00 : f32
    %625 = vector.broadcast %cst_115 : f32 to vector<8x128xf32>
    %626 = arith.cmpf oge, %617, %625 : vector<8x128xf32>
    %cst_116 = arith.constant 1.000000e+00 : f32
    %627 = vector.broadcast %cst_116 : f32 to vector<8x128xf32>
    %628 = arith.select %626, %627, %622 : vector<8x128xi1>, vector<8x128xf32>
    %629 = arith.addf %624, %628 : vector<8x128xf32>
    %cst_117 = arith.constant 2.000000e+00 : f32
    %630 = vector.broadcast %cst_117 : f32 to vector<8x128xf32>
    %631 = arith.mulf %630, %622 : vector<8x128xf32>
    %cst_118 = arith.constant 2.000000e+00 : f32
    %632 = vector.broadcast %cst_118 : f32 to vector<8x128xf32>
    %633 = arith.select %626, %631, %632 : vector<8x128xi1>, vector<8x128xf32>
    %634 = arith.addf %629, %633 : vector<8x128xf32>
    %635 = arith.mulf %617, %629 : vector<8x128xf32>
    %636 = tpu.reciprocal %634 {approx = true} : vector<8x128xf32> -> vector<8x128xf32>
    %637 = arith.mulf %634, %636 : vector<8x128xf32>
    %cst_119 = arith.constant 2.000000e+00 : f32
    %638 = vector.broadcast %cst_119 : f32 to vector<8x128xf32>
    %639 = arith.subf %638, %637 : vector<8x128xf32>
    %640 = arith.mulf %636, %639 : vector<8x128xf32>
    %641 = arith.mulf %635, %640 : vector<8x128xf32>
    %642 = vector.broadcast %67 : f32 to vector<8x128xf32>
    %643 = arith.mulf %428, %642 : vector<8x128xf32>
    %644 = vector.broadcast %68 : f32 to vector<8x128xf32>
    %645 = arith.mulf %462, %644 : vector<8x128xf32>
    %646 = arith.addf %643, %645 : vector<8x128xf32>
    %647 = vector.broadcast %69 : f32 to vector<8x128xf32>
    %648 = arith.mulf %496, %647 : vector<8x128xf32>
    %649 = arith.addf %646, %648 : vector<8x128xf32>
    %650 = vector.broadcast %70 : f32 to vector<8x128xf32>
    %651 = arith.mulf %530, %650 : vector<8x128xf32>
    %652 = arith.addf %649, %651 : vector<8x128xf32>
    %653 = vector.broadcast %74 : f32 to vector<8x128xf32>
    %654 = arith.addf %652, %653 : vector<8x128xf32>
    %655 = math.absf %654 : vector<8x128xf32>
    %cst_120 = arith.constant 0.000000e+00 : f32
    %656 = vector.broadcast %cst_120 : f32 to vector<8x128xf32>
    %657 = arith.subf %656, %655 : vector<8x128xf32>
    %658 = math.exp %657 : vector<8x128xf32>
    %659 = arith.mulf %658, %658 : vector<8x128xf32>
    %cst_121 = arith.constant 2.000000e+00 : f32
    %660 = vector.broadcast %cst_121 : f32 to vector<8x128xf32>
    %661 = arith.mulf %660, %658 : vector<8x128xf32>
    %cst_122 = arith.constant 0.000000e+00 : f32
    %662 = vector.broadcast %cst_122 : f32 to vector<8x128xf32>
    %663 = arith.cmpf oge, %654, %662 : vector<8x128xf32>
    %cst_123 = arith.constant 1.000000e+00 : f32
    %664 = vector.broadcast %cst_123 : f32 to vector<8x128xf32>
    %665 = arith.select %663, %664, %659 : vector<8x128xi1>, vector<8x128xf32>
    %666 = arith.addf %661, %665 : vector<8x128xf32>
    %cst_124 = arith.constant 2.000000e+00 : f32
    %667 = vector.broadcast %cst_124 : f32 to vector<8x128xf32>
    %668 = arith.mulf %667, %659 : vector<8x128xf32>
    %cst_125 = arith.constant 2.000000e+00 : f32
    %669 = vector.broadcast %cst_125 : f32 to vector<8x128xf32>
    %670 = arith.select %663, %668, %669 : vector<8x128xi1>, vector<8x128xf32>
    %671 = arith.addf %666, %670 : vector<8x128xf32>
    %672 = arith.mulf %654, %666 : vector<8x128xf32>
    %673 = tpu.reciprocal %671 {approx = true} : vector<8x128xf32> -> vector<8x128xf32>
    %674 = arith.mulf %671, %673 : vector<8x128xf32>
    %cst_126 = arith.constant 2.000000e+00 : f32
    %675 = vector.broadcast %cst_126 : f32 to vector<8x128xf32>
    %676 = arith.subf %675, %674 : vector<8x128xf32>
    %677 = arith.mulf %673, %676 : vector<8x128xf32>
    %678 = arith.mulf %672, %677 : vector<8x128xf32>
    %679 = vector.broadcast %75 : f32 to vector<8x128xf32>
    %680 = arith.mulf %567, %679 : vector<8x128xf32>
    %681 = vector.broadcast %76 : f32 to vector<8x128xf32>
    %682 = arith.mulf %604, %681 : vector<8x128xf32>
    %683 = arith.addf %680, %682 : vector<8x128xf32>
    %684 = vector.broadcast %77 : f32 to vector<8x128xf32>
    %685 = arith.mulf %641, %684 : vector<8x128xf32>
    %686 = arith.addf %683, %685 : vector<8x128xf32>
    %687 = vector.broadcast %78 : f32 to vector<8x128xf32>
    %688 = arith.mulf %678, %687 : vector<8x128xf32>
    %689 = arith.addf %686, %688 : vector<8x128xf32>
    %690 = vector.broadcast %91 : f32 to vector<8x128xf32>
    %691 = arith.addf %689, %690 : vector<8x128xf32>
    %692 = arith.addf %691, %428 : vector<8x128xf32>
    %693 = arith.addf %692, %96 : vector<8x128xf32>
    %c0_127 = arith.constant 0 : index
    %c0_128 = arith.constant 0 : index
    %c0_129 = arith.constant 0 : index
    %c0_130 = arith.constant 0 : index
    %694 = vector.load %arg4[%c0_127, %c0_128, %c0_129, %c0_130] : memref<1x4x8x128xf32, #tpu.memory_space<vmem>>, vector<1x1x8x128xf32>
    %695 = vector.shape_cast %694 : vector<1x1x8x128xf32> to vector<8x128xf32>
    %696 = vector.shape_cast %693 : vector<8x128xf32> to vector<1x1x8x128xf32>
    tpu.vector_store %arg4[%c0_127, %c0_128, %c0_129, %c0_130], %696 {strides = array<i32>} : memref<1x4x8x128xf32, #tpu.memory_space<vmem>>, vector<1x1x8x128xf32>,
    %697 = vector.broadcast %79 : f32 to vector<8x128xf32>
    %698 = arith.mulf %567, %697 : vector<8x128xf32>
    %699 = vector.broadcast %80 : f32 to vector<8x128xf32>
    %700 = arith.mulf %604, %699 : vector<8x128xf32>
    %701 = arith.addf %698, %700 : vector<8x128xf32>
    %702 = vector.broadcast %81 : f32 to vector<8x128xf32>
    %703 = arith.mulf %641, %702 : vector<8x128xf32>
    %704 = arith.addf %701, %703 : vector<8x128xf32>
    %705 = vector.broadcast %82 : f32 to vector<8x128xf32>
    %706 = arith.mulf %678, %705 : vector<8x128xf32>
    %707 = arith.addf %704, %706 : vector<8x128xf32>
    %708 = vector.broadcast %92 : f32 to vector<8x128xf32>
    %709 = arith.addf %707, %708 : vector<8x128xf32>
    %710 = arith.addf %709, %462 : vector<8x128xf32>
    %711 = arith.addf %710, %98 : vector<8x128xf32>
    %c0_131 = arith.constant 0 : index
    %c1_132 = arith.constant 1 : index
    %c0_133 = arith.constant 0 : index
    %c0_134 = arith.constant 0 : index
    %712 = vector.load %arg4[%c0_131, %c1_132, %c0_133, %c0_134] : memref<1x4x8x128xf32, #tpu.memory_space<vmem>>, vector<1x1x8x128xf32>
    %713 = vector.shape_cast %712 : vector<1x1x8x128xf32> to vector<8x128xf32>
    %714 = vector.shape_cast %711 : vector<8x128xf32> to vector<1x1x8x128xf32>
    tpu.vector_store %arg4[%c0_131, %c1_132, %c0_133, %c0_134], %714 {strides = array<i32>} : memref<1x4x8x128xf32, #tpu.memory_space<vmem>>, vector<1x1x8x128xf32>,
    %715 = vector.broadcast %83 : f32 to vector<8x128xf32>
    %716 = arith.mulf %567, %715 : vector<8x128xf32>
    %717 = vector.broadcast %84 : f32 to vector<8x128xf32>
    %718 = arith.mulf %604, %717 : vector<8x128xf32>
    %719 = arith.addf %716, %718 : vector<8x128xf32>
    %720 = vector.broadcast %85 : f32 to vector<8x128xf32>
    %721 = arith.mulf %641, %720 : vector<8x128xf32>
    %722 = arith.addf %719, %721 : vector<8x128xf32>
    %723 = vector.broadcast %86 : f32 to vector<8x128xf32>
    %724 = arith.mulf %678, %723 : vector<8x128xf32>
    %725 = arith.addf %722, %724 : vector<8x128xf32>
    %726 = vector.broadcast %93 : f32 to vector<8x128xf32>
    %727 = arith.addf %725, %726 : vector<8x128xf32>
    %728 = arith.addf %727, %496 : vector<8x128xf32>
    %729 = arith.addf %728, %100 : vector<8x128xf32>
    %c0_135 = arith.constant 0 : index
    %c2_136 = arith.constant 2 : index
    %c0_137 = arith.constant 0 : index
    %c0_138 = arith.constant 0 : index
    %730 = vector.load %arg4[%c0_135, %c2_136, %c0_137, %c0_138] : memref<1x4x8x128xf32, #tpu.memory_space<vmem>>, vector<1x1x8x128xf32>
    %731 = vector.shape_cast %730 : vector<1x1x8x128xf32> to vector<8x128xf32>
    %732 = vector.shape_cast %729 : vector<8x128xf32> to vector<1x1x8x128xf32>
    tpu.vector_store %arg4[%c0_135, %c2_136, %c0_137, %c0_138], %732 {strides = array<i32>} : memref<1x4x8x128xf32, #tpu.memory_space<vmem>>, vector<1x1x8x128xf32>,
    %733 = vector.broadcast %87 : f32 to vector<8x128xf32>
    %734 = arith.mulf %567, %733 : vector<8x128xf32>
    %735 = vector.broadcast %88 : f32 to vector<8x128xf32>
    %736 = arith.mulf %604, %735 : vector<8x128xf32>
    %737 = arith.addf %734, %736 : vector<8x128xf32>
    %738 = vector.broadcast %89 : f32 to vector<8x128xf32>
    %739 = arith.mulf %641, %738 : vector<8x128xf32>
    %740 = arith.addf %737, %739 : vector<8x128xf32>
    %741 = vector.broadcast %90 : f32 to vector<8x128xf32>
    %742 = arith.mulf %678, %741 : vector<8x128xf32>
    %743 = arith.addf %740, %742 : vector<8x128xf32>
    %744 = vector.broadcast %94 : f32 to vector<8x128xf32>
    %745 = arith.addf %743, %744 : vector<8x128xf32>
    %746 = arith.addf %745, %530 : vector<8x128xf32>
    %747 = arith.addf %746, %102 : vector<8x128xf32>
    %c0_139 = arith.constant 0 : index
    %c3_140 = arith.constant 3 : index
    %c0_141 = arith.constant 0 : index
    %c0_142 = arith.constant 0 : index
    %748 = vector.load %arg4[%c0_139, %c3_140, %c0_141, %c0_142] : memref<1x4x8x128xf32, #tpu.memory_space<vmem>>, vector<1x1x8x128xf32>
    %749 = vector.shape_cast %748 : vector<1x1x8x128xf32> to vector<8x128xf32>
    %750 = vector.shape_cast %747 : vector<8x128xf32> to vector<1x1x8x128xf32>
    tpu.vector_store %arg4[%c0_139, %c3_140, %c0_141, %c0_142], %750 {strides = array<i32>} : memref<1x4x8x128xf32, #tpu.memory_space<vmem>>, vector<1x1x8x128xf32>,
    return
  }
  func.func @transform_0(%arg0: i32, %arg1: i32, %arg2: memref<95xf32, #tpu.memory_space<smem>>) -> (i32, i32, i32, i32) {
    %c0_i32 = arith.constant 0 : i32
    %c0_i32_0 = arith.constant 0 : i32
    %c0_i32_1 = arith.constant 0 : i32
    return %arg0, %c0_i32, %arg1, %c0_i32_0 : i32, i32, i32, i32
  }
  func.func @transform_1(%arg0: i32, %arg1: i32, %arg2: memref<95xf32, #tpu.memory_space<smem>>) -> (i32, i32, i32, i32) {
    %c0_i32 = arith.constant 0 : i32
    %c0_i32_0 = arith.constant 0 : i32
    %c0_i32_1 = arith.constant 0 : i32
    return %arg0, %c0_i32, %arg1, %c0_i32_0 : i32, i32, i32, i32
  }
}

</mosaic_0001>

<llo_original>
// kernel: tpu_custom_call.1
$region0: #{tpu_custom_call.1}
  #allocation0 [shape = 'u32[]', space=smem, size = 0x4, offset = 0x4, fixed_abs, tag = 'smem constant byte address 0x4 - core index']
  #allocation1 [shape = 'u32[144,128]{1,0:T(1,128)}', space=vmem, size = 0x12000, scoped, tag = 'internal scratch']
  #allocation2 [shape = 's32[1]{0}', space=sflag, size = 0x4, scoped, tag = 'scoped memory for tpu_custom_call.1']
  #allocation3 [shape = 'u8[512]{0}', space=smem, size = 0x200, scoped, tag = 'prefetched SMEM operand 0']
  %s0 = inlined_call_operand.hbm [shape: f32[95], index: 0, kind: input, shape index: {}]
  %s1 = inlined_call_operand.hbm [shape: f32[2,4,8,128], index: 1, kind: input, shape index: {}]
  %s2 = inlined_call_operand.hbm [shape: f32[2,4,8,128], index: 2, kind: output, shape index: {}]
  %s3 = sld [smem:[#allocation0]]
  $region41: #{tpu_custom_call.1} parent=0
    _
  %s5 = ssub.s32 1, %s3
  %s6 = scalar_select 0, %s5, %s3
  %8 = dma.hbm_to_smem %s0, 16, [#allocation3], [#allocation2]
  %9 = dma.done [#allocation2], 16
  %10 = sfence
  $region1: #{tpu_custom_call.1} parent=0
    #allocation4 [shape = 'u8[32768]{0}', space=vmem, size = 0x8000, scoped, tag = 'input window, operand 1']
    #allocation5 [shape = 's32[2]{0}', space=sflag, size = 0x8, scoped, tag = 'scoped memory for tpu_custom_call.1']
    #allocation6 [shape = 's32[2]{0}', space=sflag, size = 0x8, scoped, tag = 'scoped memory for tpu_custom_call.1']
    #allocation7 [shape = 'u8[32768]{0}', space=vmem, size = 0x8000, scoped, tag = 'output window, operand 0']
    %11 = vsyncpa [#allocation5], 0
    %s12 = scalar_lea.sflag [#allocation5], 1
    %13 = vsyncpa %s12, 0
    %14 = vsyncpa [#allocation6], 0
    %s15 = scalar_lea.sflag [#allocation6], 1
    %16 = vsyncpa %s15, 0
    loop: start=0, step=1, limit=4
    $region2: #{tpu_custom_call.1} parent=1 // loop_pre_header
      _
    $region3: #{tpu_custom_call.1} parent=1 // loop_header
      %s18 = sphi 0, %s22
      %p19 = scmp.ge.s32.totalorder %s18, 4
      %s25 = sphi 0, %s37
      %s26 = sphi 0, %s33
      %s27 = sphi 0, %s25
      %s28 = sphi 0, %s26
      %s29 = sphi 0, %s27
      %s30 = sphi 0, %s28
      %s42 = sphi 0, %s44
      %s45 = sphi 0, %s42
      %s46 = sphi 0, %s45
      %s62 = sphi 0, %s46
      %s70 = sphi 0, %s72
      %s73 = sphi 0, %s70
      %s74 = sphi 0, %s73
      %s90 = sphi 0, %s74
    $region4: #{tpu_custom_call.1} parent=1 // loop_header_branch
      %21 = sbr.rel (%p19) target = $region8
    $region5: #{tpu_custom_call.1} parent=1 // loop_body
      %s23 = ssub.s32 %s18, 1
      %s24 = ssub.s32 %s18, 2
      %s31 = sadd.s32 1, %s26
      %p32 = scmp.ge.s32.totalorder %s31, 1
      %s33 = scalar_select %p32, 0, %s31
      %s34 = sadd.s32 1, %s25
      %s35 = scalar_select %p32, %s34, %s25
      %p36 = scmp.ge.s32.totalorder %s35, 2
      %s37 = scalar_select %p36, 0, %s35
      %s38 = ssub.s32 %s25, %s37
      %s39 = ssub.s32 %s26, %s33
      %s40 = sor.u32 %s38, %s39
      %p41 = scmp.eq.s32.totalorder %s40, 0
      %s43 = sadd.s32 %s42, 1
      %s44 = scalar_select %p41, %s42, %s43
      %p47 = pneg %p41
      %p48 = scmp.eq.s32.totalorder %s18, 1
      %p49 = por %p47, %p48
      %p50 = scmp.ne.s32.totalorder %s42, %s45
      %p51 = scmp.eq.s32.totalorder %s18, 0
      %p52 = por %p50, %p51
      %p53 = scmp.ne.s32.totalorder %s42, %s45
      %p54 = scmp.eq.s32.totalorder %s23, 1
      %p55 = por %p53, %p54
      %p56 = scmp.ne.s32.totalorder %s45, %s46
      %p57 = scmp.eq.s32.totalorder %s23, 0
      %p58 = por %p56, %p57
      %p59 = scmp.ne.s32.totalorder %s45, %s46
      %p60 = scmp.eq.s32.totalorder %s24, 1
      %p61 = por %p59, %p60
      %p63 = scmp.ne.s32.totalorder %s46, %s62
      %p64 = scmp.eq.s32.totalorder %s24, 0
      %p65 = por %p63, %p64
      %s66 = ssub.s32 %s25, %s37
      %s67 = ssub.s32 %s26, %s33
      %s68 = sor.u32 %s66, %s67
      %p69 = scmp.eq.s32.totalorder %s68, 0
      %s71 = sadd.s32 %s70, 1
      %s72 = scalar_select %p69, %s70, %s71
      %p75 = pneg %p69
      %p76 = scmp.eq.s32.totalorder %s18, 1
      %p77 = por %p75, %p76
      %p78 = scmp.ne.s32.totalorder %s70, %s73
      %p79 = scmp.eq.s32.totalorder %s18, 0
      %p80 = por %p78, %p79
      %p81 = scmp.ne.s32.totalorder %s70, %s73
      %p82 = scmp.eq.s32.totalorder %s23, 1
      %p83 = por %p81, %p82
      %p84 = scmp.ne.s32.totalorder %s73, %s74
      %p85 = scmp.eq.s32.totalorder %s23, 0
      %p86 = por %p84, %p85
      %p87 = scmp.ne.s32.totalorder %s73, %s74
      %p88 = scmp.eq.s32.totalorder %s24, 1
      %p89 = por %p87, %p88
      %p91 = scmp.ne.s32.totalorder %s74, %s90
      %p92 = scmp.eq.s32.totalorder %s24, 0
      %p93 = por %p91, %p92
      %p94 = scmp.le.s32.totalorder 1, %s18
      %p95 = scmp.lt.s32.totalorder %s18, 3
      %p96 = pnand %p94, %p95
      %p97 = pneg %p96
      // Predicated region
      $region9: #{tpu_custom_call.1} parent=5 // pred_check
        _
      $region10: #{tpu_custom_call.1} parent=5 // pred_check_branch
        %99 = sbr.rel (%p96) target = $region12
      $region11: #{tpu_custom_call.1} parent=5 // pred_region
        %s100 = ssub.s32 %s18, 1
      $region12: #{tpu_custom_call.1} parent=5 // pred_fallthru
        _
      %p101 = scmp.lt.s32.totalorder %s18, 2
      // Predicated region
      $region13: #{tpu_custom_call.1} parent=5 // pred_check
        %p102 = pneg %p101
      $region14: #{tpu_custom_call.1} parent=5 // pred_check_branch
        %104 = sbr.rel (%p102) target = $region16
      $region15: #{tpu_custom_call.1} parent=5 // pred_region
        // Predicated region
        $region17: #{tpu_custom_call.1} parent=15 // pred_check
          %p105 = pneg %p52
        $region18: #{tpu_custom_call.1} parent=15 // pred_check_branch
          %107 = sbr.rel (%p105) target = $region20
        $region19: #{tpu_custom_call.1} parent=15 // pred_region
          %s108 = sand.u32 %s42, 1
          %s109 = scalar_lea.sflag [#allocation5], %s108
          %s110 = sand.u32 %s42, 1
          %s111 = smul.addr %s110, 32
          %s112 = scalar_lea.vmem [#allocation4], %s111
          %s114 = ssub.s32 512, 512
          %115 = vsyncadd %s109, %s114
          %s116 = smul.addr %s25, 4
          %s117 = sadd.s32 %s26, %s116
          %s118 = smul.addr %s117, 128
          %s119 = scalar_lea.hbm %s1, %s118
          %s120 = sshll.u32 %s112, 4
          %s121 = int_to_ptr.vmem [resolvable:$true] %s120
          %126 = dma.hbm_to_vmem [thread:$0]  %s119, 512, %s121, %s109, 128, 128, 8
        $region20: #{tpu_custom_call.1} parent=15 // pred_fallthru
          _
      $region16: #{tpu_custom_call.1} parent=5 // pred_fallthru
        _
      %p127 = scmp.le.s32.totalorder 1, %s18
      %p128 = scmp.lt.s32.totalorder %s18, 3
      %p129 = pnand %p127, %p128
      %p130 = pneg %p129
      // Predicated region
      $region21: #{tpu_custom_call.1} parent=5 // pred_check
        _
      $region22: #{tpu_custom_call.1} parent=5 // pred_check_branch
        %132 = sbr.rel (%p129) target = $region24
      $region23: #{tpu_custom_call.1} parent=5 // pred_region
        %s133 = ssub.s32 %s18, 1
        %s134 = sand.u32 %s45, 1
        %s135 = scalar_lea.sflag [#allocation5], %s134
        %s136 = sand.u32 %s45, 1
        %s137 = smul.addr %s136, 32
        %s138 = scalar_lea.vmem [#allocation4], %s137
        // Predicated region
        $region25: #{tpu_custom_call.1} parent=23 // pred_check
          %p139 = pneg %p58
        $region26: #{tpu_custom_call.1} parent=23 // pred_check_branch
          %141 = sbr.rel (%p139) target = $region28
        $region27: #{tpu_custom_call.1} parent=23 // pred_region
          %142 = dma.done %s135, 512
        $region28: #{tpu_custom_call.1} parent=23 // pred_fallthru
          _
        %s143 = sand.u32 %s45, 1
        %s144 = scalar_lea.sflag [#allocation5], %s143
        %s145 = sand.u32 %s45, 1
        %s146 = smul.addr %s145, 32
        %s147 = scalar_lea.vmem [#allocation4], %s146
        %p148 = pneg %p58
        %p149 = pneg %p55
        %p150 = pneg %p86
        %p151 = pneg %p83
        %s152 = sand.u32 %s73, 1
        %s153 = scalar_lea.sflag [#allocation6], %s152
        %s154 = sand.u32 %s73, 1
        %s155 = smul.addr %s154, 32
        %s156 = scalar_lea.vmem [#allocation7], %s155
        %s157 = sld [smem:[#allocation3]]
        %s158 = sld [smem:[#allocation3 + $0x1]]
        %s159 = sld [smem:[#allocation3 + $0x2]]
        %s160 = sld [smem:[#allocation3 + $0x3]]
        %s161 = sld [smem:[#allocation3 + $0x4]]
        %s162 = sld [smem:[#allocation3 + $0x5]]
        %s163 = sld [smem:[#allocation3 + $0x6]]
        %s164 = sld [smem:[#allocation3 + $0x7]]
        %s165 = sld [smem:[#allocation3 + $0x8]]
        %s166 = sld [smem:[#allocation3 + $0x9]]
        %s167 = sld [smem:[#allocation3 + $0xa]]
        %s168 = sld [smem:[#allocation3 + $0xb]]
        %s169 = sld [smem:[#allocation3 + $0xc]]
        %s170 = sld [smem:[#allocation3 + $0xd]]
        %s171 = sld [smem:[#allocation3 + $0xe]]
        %s172 = sld [smem:[#allocation3 + $0xf]]
        %s173 = sld [smem:[#allocation3 + $0x10]]
        %s174 = sld [smem:[#allocation3 + $0x11]]
        %s175 = sld [smem:[#allocation3 + $0x12]]
        %s176 = sld [smem:[#allocation3 + $0x13]]
        %s177 = sld [smem:[#allocation3 + $0x14]]
        %s178 = sld [smem:[#allocation3 + $0x15]]
        %s179 = sld [smem:[#allocation3 + $0x16]]
        %s180 = sld [smem:[#allocation3 + $0x17]]
        %s181 = sld [smem:[#allocation3 + $0x18]]
        %s182 = sld [smem:[#allocation3 + $0x19]]
        %s183 = sld [smem:[#allocation3 + $0x1a]]
        %s184 = sld [smem:[#allocation3 + $0x1b]]
        %s185 = sld [smem:[#allocation3 + $0x1c]]
        %s186 = sld [smem:[#allocation3 + $0x1d]]
        %s187 = sld [smem:[#allocation3 + $0x1e]]
        %s188 = sld [smem:[#allocation3 + $0x1f]]
        %s189 = sld [smem:[#allocation3 + $0x20]]
        %s190 = sld [smem:[#allocation3 + $0x21]]
        %s191 = sld [smem:[#allocation3 + $0x22]]
        %s192 = sld [smem:[#allocation3 + $0x23]]
        %s193 = sld [smem:[#allocation3 + $0x24]]
        %s194 = sld [smem:[#allocation3 + $0x25]]
        %s195 = sld [smem:[#allocation3 + $0x26]]
        %s196 = sld [smem:[#allocation3 + $0x27]]
        %s197 = sld [smem:[#allocation3 + $0x28]]
        %s198 = sld [smem:[#allocation3 + $0x29]]
        %s199 = sld [smem:[#allocation3 + $0x2a]]
        %s200 = sld [smem:[#allocation3 + $0x2b]]
        %s201 = sld [smem:[#allocation3 + $0x2c]]
        %s202 = sld [smem:[#allocation3 + $0x2d]]
        %s203 = sld [smem:[#allocation3 + $0x2e]]
        %s204 = sld [smem:[#allocation3 + $0x2f]]
        %s205 = sld [smem:[#allocation3 + $0x30]]
        %s206 = sld [smem:[#allocation3 + $0x31]]
        %s207 = sld [smem:[#allocation3 + $0x32]]
        %s208 = sld [smem:[#allocation3 + $0x33]]
        %s209 = sld [smem:[#allocation3 + $0x34]]
        %s210 = sld [smem:[#allocation3 + $0x35]]
        %s211 = sld [smem:[#allocation3 + $0x36]]
        %s212 = sld [smem:[#allocation3 + $0x37]]
        %s213 = sld [smem:[#allocation3 + $0x38]]
        %s214 = sld [smem:[#allocation3 + $0x39]]
        %s215 = sld [smem:[#allocation3 + $0x3a]]
        %s216 = sld [smem:[#allocation3 + $0x3b]]
        %s217 = sld [smem:[#allocation3 + $0x3c]]
        %s218 = sld [smem:[#allocation3 + $0x3d]]
        %s219 = sld [smem:[#allocation3 + $0x3e]]
        %s220 = sld [smem:[#allocation3 + $0x3f]]
        %s221 = sld [smem:[#allocation3 + $0x40]]
        %s222 = sld [smem:[#allocation3 + $0x41]]
        %s223 = sld [smem:[#allocation3 + $0x42]]
        %s224 = sld [smem:[#allocation3 + $0x43]]
        %s225 = sld [smem:[#allocation3 + $0x44]]
        %s226 = sld [smem:[#allocation3 + $0x45]]
        %s227 = sld [smem:[#allocation3 + $0x46]]
        %s228 = sld [smem:[#allocation3 + $0x47]]
        %s229 = sld [smem:[#allocation3 + $0x48]]
        %s230 = sld [smem:[#allocation3 + $0x49]]
        %s231 = sld [smem:[#allocation3 + $0x4a]]
        %s232 = sld [smem:[#allocation3 + $0x4b]]
        %s233 = sld [smem:[#allocation3 + $0x4c]]
        %s234 = sld [smem:[#allocation3 + $0x4d]]
        %s235 = sld [smem:[#allocation3 + $0x4e]]
        %s236 = sld [smem:[#allocation3 + $0x4f]]
        %s237 = sld [smem:[#allocation3 + $0x50]]
        %s238 = sld [smem:[#allocation3 + $0x51]]
        %s239 = sld [smem:[#allocation3 + $0x52]]
        %s240 = sld [smem:[#allocation3 + $0x53]]
        %s241 = sld [smem:[#allocation3 + $0x54]]
        %s242 = sld [smem:[#allocation3 + $0x55]]
        %s243 = sld [smem:[#allocation3 + $0x56]]
        %s244 = sld [smem:[#allocation3 + $0x57]]
        %s245 = sld [smem:[#allocation3 + $0x58]]
        %s246 = sld [smem:[#allocation3 + $0x59]]
        %s247 = sld [smem:[#allocation3 + $0x5a]]
        %s248 = sld [smem:[#allocation3 + $0x5b]]
        %s249 = sld [smem:[#allocation3 + $0x5c]]
        %s250 = sld [smem:[#allocation3 + $0x5d]]
        %s251 = sld [smem:[#allocation3 + $0x5e]]
        %v252 = vld [vmem:[%s138] sm:$0xff]
        %s253 = scalar_lea.vmem %s138, 8 [#allocation4]
        %v254 = vld [vmem:[%s253] sm:$0xff]
        %s255 = scalar_lea.vmem %s138, 16 [#allocation4]
        %v256 = vld [vmem:[%s255] sm:$0xff]
        %s257 = scalar_lea.vmem %s138, 24 [#allocation4]
        %v258 = vld [vmem:[%s257] sm:$0xff]
        %v259 = vstv %s157
        %v260 = vmul.f32 %v252, %v259
        %v261 = vstv %s158
        %v262 = vmul.f32 %v254, %v261
        %v263 = vadd.f32 %v260, %v262
        %v264 = vstv %s159
        %v265 = vmul.f32 %v256, %v264
        %v266 = vadd.f32 %v263, %v265
        %v267 = vstv %s160
        %v268 = vmul.f32 %v258, %v267
        %v269 = vadd.f32 %v266, %v268
        %v270 = vstv %s165
        %v271 = vadd.f32 %v269, %v270
        %v272 = vand.u32 2147483647, %v271
        %v273 = vsub.f32 0.0, %v272
        %v274 = vmul.f32 %v273, 1.442695
        %v275 = vpow.pop %v274
        %v276 = vmul.f32 %v275, %v275
        %v277 = vmul.f32 %v275, 2.0
        %vm278 = vcmp.ge.f32.partialorder %v271, 0.0
        %v279 = vsel %vm278, 1.0, %v276
        %v280 = vadd.f32 %v277, %v279
        %v281 = vmul.f32 %v276, 2.0
        %v282 = vsel %vm278, %v281, 2.0
        %v283 = vadd.f32 %v280, %v282
        %v284 = vmul.f32 %v271, %v280
        %v285 = vrcp.pop %v283
        %v286 = vmul.f32 %v283, %v285
        %v287 = vsub.f32 2.0, %v286
        %v288 = vmul.f32 %v285, %v287
        %v289 = vmul.f32 %v284, %v288
        %v290 = vstv %s161
        %v291 = vmul.f32 %v252, %v290
        %v292 = vstv %s162
        %v293 = vmul.f32 %v254, %v292
        %v294 = vadd.f32 %v291, %v293
        %v295 = vstv %s163
        %v296 = vmul.f32 %v256, %v295
        %v297 = vadd.f32 %v294, %v296
        %v298 = vstv %s164
        %v299 = vmul.f32 %v258, %v298
        %v300 = vadd.f32 %v297, %v299
        %v301 = vstv %s166
        %v302 = vadd.f32 %v300, %v301
        %v303 = vand.u32 2147483647, %v302
        %v304 = vsub.f32 0.0, %v303
        %v305 = vmul.f32 %v304, 1.442695
        %v306 = vpow.pop %v305
        %v307 = vmul.f32 %v306, %v306
        %v308 = vmul.f32 %v306, 2.0
        %vm309 = vcmp.ge.f32.partialorder %v302, 0.0
        %v310 = vsel %vm309, 1.0, %v307
        %v311 = vadd.f32 %v308, %v310
        %v312 = vmul.f32 %v307, 2.0
        %v313 = vsel %vm309, %v312, 2.0
        %v314 = vadd.f32 %v311, %v313
        %v315 = vmul.f32 %v302, %v311
        %v316 = vrcp.pop %v314
        %v317 = vmul.f32 %v314, %v316
        %v318 = vsub.f32 2.0, %v317
        %v319 = vmul.f32 %v316, %v318
        %v320 = vmul.f32 %v315, %v319
        %v321 = vstv %s167
        %v322 = vmul.f32 %v252, %v321
        %v323 = vstv %s168
        %v324 = vmul.f32 %v254, %v323
        %v325 = vadd.f32 %v322, %v324
        %v326 = vstv %s169
        %v327 = vmul.f32 %v256, %v326
        %v328 = vadd.f32 %v325, %v327
        %v329 = vstv %s170
        %v330 = vmul.f32 %v258, %v329
        %v331 = vadd.f32 %v328, %v330
        %v332 = vstv %s175
        %v333 = vadd.f32 %v331, %v332
        %v334 = vand.u32 2147483647, %v333
        %v335 = vsub.f32 0.0, %v334
        %v336 = vmul.f32 %v335, 1.442695
        %v337 = vpow.pop %v336
        %v338 = vmul.f32 %v337, %v337
        %v339 = vmul.f32 %v337, 2.0
        %vm340 = vcmp.ge.f32.partialorder %v333, 0.0
        %v341 = vsel %vm340, 1.0, %v338
        %v342 = vadd.f32 %v339, %v341
        %v343 = vmul.f32 %v338, 2.0
        %v344 = vsel %vm340, %v343, 2.0
        %v345 = vadd.f32 %v342, %v344
        %v346 = vmul.f32 %v333, %v342
        %v347 = vrcp.pop %v345
        %v348 = vmul.f32 %v345, %v347
        %v349 = vsub.f32 2.0, %v348
        %v350 = vmul.f32 %v347, %v349
        %v351 = vmul.f32 %v346, %v350
        %v352 = vstv %s171
        %v353 = vmul.f32 %v252, %v352
        %v354 = vstv %s172
        %v355 = vmul.f32 %v254, %v354
        %v356 = vadd.f32 %v353, %v355
        %v357 = vstv %s173
        %v358 = vmul.f32 %v256, %v357
        %v359 = vadd.f32 %v356, %v358
        %v360 = vstv %s174
        %v361 = vmul.f32 %v258, %v360
        %v362 = vadd.f32 %v359, %v361
        %v363 = vstv %s176
        %v364 = vadd.f32 %v362, %v363
        %v365 = vand.u32 2147483647, %v364
        %v366 = vsub.f32 0.0, %v365
        %v367 = vmul.f32 %v366, 1.442695
        %v368 = vpow.pop %v367
        %v369 = vmul.f32 %v368, %v368
        %v370 = vmul.f32 %v368, 2.0
        %vm371 = vcmp.ge.f32.partialorder %v364, 0.0
        %v372 = vsel %vm371, 1.0, %v369
        %v373 = vadd.f32 %v370, %v372
        %v374 = vmul.f32 %v369, 2.0
        %v375 = vsel %vm371, %v374, 2.0
        %v376 = vadd.f32 %v373, %v375
        %v377 = vmul.f32 %v364, %v373
        %v378 = vrcp.pop %v376
        %v379 = vmul.f32 %v376, %v378
        %v380 = vsub.f32 2.0, %v379
        %v381 = vmul.f32 %v378, %v380
        %v382 = vmul.f32 %v377, %v381
        %v383 = vstv %s177
        %v384 = vmul.f32 %v252, %v383
        %v385 = vstv %s178
        %v386 = vmul.f32 %v254, %v385
        %v387 = vadd.f32 %v384, %v386
        %v388 = vstv %s179
        %v389 = vmul.f32 %v256, %v388
        %v390 = vadd.f32 %v387, %v389
        %v391 = vstv %s180
        %v392 = vmul.f32 %v258, %v391
        %v393 = vadd.f32 %v390, %v392
        %v394 = vstv %s185
        %v395 = vadd.f32 %v393, %v394
        %v396 = vand.u32 2147483647, %v395
        %v397 = vsub.f32 0.0, %v396
        %v398 = vmul.f32 %v397, 1.442695
        %v399 = vpow.pop %v398
        %v400 = vmul.f32 %v399, %v399
        %v401 = vmul.f32 %v399, 2.0
        %vm402 = vcmp.ge.f32.partialorder %v395, 0.0
        %v403 = vsel %vm402, 1.0, %v400
        %v404 = vadd.f32 %v401, %v403
        %v405 = vmul.f32 %v400, 2.0
        %v406 = vsel %vm402, %v405, 2.0
        %v407 = vadd.f32 %v404, %v406
        %v408 = vmul.f32 %v395, %v404
        %v409 = vrcp.pop %v407
        %v410 = vmul.f32 %v407, %v409
        %v411 = vsub.f32 2.0, %v410
        %v412 = vmul.f32 %v409, %v411
        %v413 = vmul.f32 %v408, %v412
        %v414 = vstv %s181
        %v415 = vmul.f32 %v252, %v414
        %v416 = vstv %s182
        %v417 = vmul.f32 %v254, %v416
        %v418 = vadd.f32 %v415, %v417
        %v419 = vstv %s183
        %v420 = vmul.f32 %v256, %v419
        %v421 = vadd.f32 %v418, %v420
        %v422 = vstv %s184
        %v423 = vmul.f32 %v258, %v422
        %v424 = vadd.f32 %v421, %v423
        %v425 = vstv %s186
        %v426 = vadd.f32 %v424, %v425
        %v427 = vand.u32 2147483647, %v426
        %v428 = vsub.f32 0.0, %v427
        %v429 = vmul.f32 %v428, 1.442695
        %v430 = vpow.pop %v429
        %v431 = vmul.f32 %v430, %v430
        %v432 = vmul.f32 %v430, 2.0
        %vm433 = vcmp.ge.f32.partialorder %v426, 0.0
        %v434 = vsel %vm433, 1.0, %v431
        %v435 = vadd.f32 %v432, %v434
        %v436 = vmul.f32 %v431, 2.0
        %v437 = vsel %vm433, %v436, 2.0
        %v438 = vadd.f32 %v435, %v437
        %v439 = vmul.f32 %v426, %v435
        %v440 = vrcp.pop %v438
        %v441 = vmul.f32 %v438, %v440
        %v442 = vsub.f32 2.0, %v441
        %v443 = vmul.f32 %v440, %v442
        %v444 = vmul.f32 %v439, %v443
        %v445 = vstv %s187
        %v446 = vmul.f32 %v289, %v445
        %v447 = vstv %s188
        %v448 = vmul.f32 %v320, %v447
        %v449 = vadd.f32 %v446, %v448
        %v450 = vstv %s189
        %v451 = vmul.f32 %v351, %v450
        %v452 = vadd.f32 %v449, %v451
        %v453 = vstv %s190
        %v454 = vmul.f32 %v382, %v453
        %v455 = vadd.f32 %v452, %v454
        %v456 = vstv %s191
        %v457 = vadd.f32 %v455, %v456
        %v458 = vand.u32 2147483647, %v457
        %v459 = vsub.f32 0.0, %v458
        %v460 = vmul.f32 %v459, 1.442695
        %v461 = vpow.pop %v460
        %v462 = vmul.f32 %v461, %v461
        %v463 = vmul.f32 %v461, 2.0
        %vm464 = vcmp.ge.f32.partialorder %v457, 0.0
        %v465 = vsel %vm464, 1.0, %v462
        %v466 = vadd.f32 %v463, %v465
        %v467 = vmul.f32 %v462, 2.0
        %v468 = vsel %vm464, %v467, 2.0
        %v469 = vadd.f32 %v466, %v468
        %v470 = vmul.f32 %v457, %v466
        %v471 = vrcp.pop %v469
        %v472 = vmul.f32 %v469, %v471
        %v473 = vsub.f32 2.0, %v472
        %v474 = vmul.f32 %v471, %v473
        %v475 = vmul.f32 %v470, %v474
        %v476 = vstv %s192
        %v477 = vmul.f32 %v475, %v476
        %v478 = vstv %s193
        %v479 = vadd.f32 %v477, %v478
        %v480 = vand.u32 2147483647, %v479
        %v481 = vsub.f32 0.0, %v480
        %v482 = vmul.f32 %v481, 1.442695
        %v483 = vpow.pop %v482
        %v484 = vmul.f32 %v483, %v483
        %v485 = vmul.f32 %v483, 2.0
        %vm486 = vcmp.ge.f32.partialorder %v479, 0.0
        %v487 = vsel %vm486, 1.0, %v484
        %v488 = vadd.f32 %v485, %v487
        %v489 = vmul.f32 %v484, 2.0
        %v490 = vsel %vm486, %v489, 2.0
        %v491 = vadd.f32 %v488, %v490
        %v492 = vmul.f32 %v479, %v488
        %v493 = vrcp.pop %v491
        %v494 = vmul.f32 %v491, %v493
        %v495 = vsub.f32 2.0, %v494
        %v496 = vmul.f32 %v493, %v495
        %v497 = vmul.f32 %v492, %v496
        %v498 = vstv %s194
        %v499 = vmul.f32 %v497, %v498
        %v500 = vstv %s195
        %v501 = vadd.f32 %v499, %v500
        %v502 = vadd.f32 %v501, %v475
        %v503 = vstv %s196
        %v504 = vmul.f32 %v502, %v503
        %v505 = vstv %s197
        %v506 = vmul.f32 %v413, %v505
        %v507 = vadd.f32 %v504, %v506
        %v508 = vstv %s198
        %v509 = vmul.f32 %v444, %v508
        %v510 = vadd.f32 %v507, %v509
        %v511 = vstv %s208
        %v512 = vadd.f32 %v510, %v511
        %v513 = vand.u32 2147483647, %v512
        %v514 = vsub.f32 0.0, %v513
        %v515 = vmul.f32 %v514, 1.442695
        %v516 = vpow.pop %v515
        %v517 = vmul.f32 %v516, %v516
        %v518 = vmul.f32 %v516, 2.0
        %vm519 = vcmp.ge.f32.partialorder %v512, 0.0
        %v520 = vsel %vm519, 1.0, %v517
        %v521 = vadd.f32 %v518, %v520
        %v522 = vmul.f32 %v517, 2.0
        %v523 = vsel %vm519, %v522, 2.0
        %v524 = vadd.f32 %v521, %v523
        %v525 = vmul.f32 %v512, %v521
        %v526 = vrcp.pop %v524
        %v527 = vmul.f32 %v524, %v526
        %v528 = vsub.f32 2.0, %v527
        %v529 = vmul.f32 %v526, %v528
        %v530 = vmul.f32 %v525, %v529
        %v531 = vstv %s199
        %v532 = vmul.f32 %v502, %v531
        %v533 = vstv %s200
        %v534 = vmul.f32 %v413, %v533
        %v535 = vadd.f32 %v532, %v534
        %v536 = vstv %s201
        %v537 = vmul.f32 %v444, %v536
        %v538 = vadd.f32 %v535, %v537
        %v539 = vstv %s209
        %v540 = vadd.f32 %v538, %v539
        %v541 = vand.u32 2147483647, %v540
        %v542 = vsub.f32 0.0, %v541
        %v543 = vmul.f32 %v542, 1.442695
        %v544 = vpow.pop %v543
        %v545 = vmul.f32 %v544, %v544
        %v546 = vmul.f32 %v544, 2.0
        %vm547 = vcmp.ge.f32.partialorder %v540, 0.0
        %v548 = vsel %vm547, 1.0, %v545
        %v549 = vadd.f32 %v546, %v548
        %v550 = vmul.f32 %v545, 2.0
        %v551 = vsel %vm547, %v550, 2.0
        %v552 = vadd.f32 %v549, %v551
        %v553 = vmul.f32 %v540, %v549
        %v554 = vrcp.pop %v552
        %v555 = vmul.f32 %v552, %v554
        %v556 = vsub.f32 2.0, %v555
        %v557 = vmul.f32 %v554, %v556
        %v558 = vmul.f32 %v553, %v557
        %v559 = vstv %s202
        %v560 = vmul.f32 %v502, %v559
        %v561 = vstv %s203
        %v562 = vmul.f32 %v413, %v561
        %v563 = vadd.f32 %v560, %v562
        %v564 = vstv %s204
        %v565 = vmul.f32 %v444, %v564
        %v566 = vadd.f32 %v563, %v565
        %v567 = vstv %s210
        %v568 = vadd.f32 %v566, %v567
        %v569 = vand.u32 2147483647, %v568
        %v570 = vsub.f32 0.0, %v569
        %v571 = vmul.f32 %v570, 1.442695
        %v572 = vpow.pop %v571
        %v573 = vmul.f32 %v572, %v572
        %v574 = vmul.f32 %v572, 2.0
        %vm575 = vcmp.ge.f32.partialorder %v568, 0.0
        %v576 = vsel %vm575, 1.0, %v573
        %v577 = vadd.f32 %v574, %v576
        %v578 = vmul.f32 %v573, 2.0
        %v579 = vsel %vm575, %v578, 2.0
        %v580 = vadd.f32 %v577, %v579
        %v581 = vmul.f32 %v568, %v577
        %v582 = vrcp.pop %v580
        %v583 = vmul.f32 %v580, %v582
        %v584 = vsub.f32 2.0, %v583
        %v585 = vmul.f32 %v582, %v584
        %v586 = vmul.f32 %v581, %v585
        %v587 = vstv %s205
        %v588 = vmul.f32 %v502, %v587
        %v589 = vstv %s206
        %v590 = vmul.f32 %v413, %v589
        %v591 = vadd.f32 %v588, %v590
        %v592 = vstv %s207
        %v593 = vmul.f32 %v444, %v592
        %v594 = vadd.f32 %v591, %v593
        %v595 = vstv %s211
        %v596 = vadd.f32 %v594, %v595
        %v597 = vand.u32 2147483647, %v596
        %v598 = vsub.f32 0.0, %v597
        %v599 = vmul.f32 %v598, 1.442695
        %v600 = vpow.pop %v599
        %v601 = vmul.f32 %v600, %v600
        %v602 = vmul.f32 %v600, 2.0
        %vm603 = vcmp.ge.f32.partialorder %v596, 0.0
        %v604 = vsel %vm603, 1.0, %v601
        %v605 = vadd.f32 %v602, %v604
        %v606 = vmul.f32 %v601, 2.0
        %v607 = vsel %vm603, %v606, 2.0
        %v608 = vadd.f32 %v605, %v607
        %v609 = vmul.f32 %v596, %v605
        %v610 = vrcp.pop %v608
        %v611 = vmul.f32 %v608, %v610
        %v612 = vsub.f32 2.0, %v611
        %v613 = vmul.f32 %v610, %v612
        %v614 = vmul.f32 %v609, %v613
        %v615 = vstv %s212
        %v616 = vmul.f32 %v530, %v615
        %v617 = vstv %s213
        %v618 = vmul.f32 %v558, %v617
        %v619 = vadd.f32 %v616, %v618
        %v620 = vstv %s214
        %v621 = vmul.f32 %v586, %v620
        %v622 = vadd.f32 %v619, %v621
        %v623 = vstv %s215
        %v624 = vmul.f32 %v614, %v623
        %v625 = vadd.f32 %v622, %v624
        %v626 = vstv %s228
        %v627 = vadd.f32 %v625, %v626
        %v628 = vand.u32 2147483647, %v627
        %v629 = vsub.f32 0.0, %v628
        %v630 = vmul.f32 %v629, 1.442695
        %v631 = vpow.pop %v630
        %v632 = vmul.f32 %v631, %v631
        %v633 = vmul.f32 %v631, 2.0
        %vm634 = vcmp.ge.f32.partialorder %v627, 0.0
        %v635 = vsel %vm634, 1.0, %v632
        %v636 = vadd.f32 %v633, %v635
        %v637 = vmul.f32 %v632, 2.0
        %v638 = vsel %vm634, %v637, 2.0
        %v639 = vadd.f32 %v636, %v638
        %v640 = vmul.f32 %v627, %v636
        %v641 = vrcp.pop %v639
        %v642 = vmul.f32 %v639, %v641
        %v643 = vsub.f32 2.0, %v642
        %v644 = vmul.f32 %v641, %v643
        %v645 = vmul.f32 %v640, %v644
        %v646 = vstv %s216
        %v647 = vmul.f32 %v530, %v646
        %v648 = vstv %s217
        %v649 = vmul.f32 %v558, %v648
        %v650 = vadd.f32 %v647, %v649
        %v651 = vstv %s218
        %v652 = vmul.f32 %v586, %v651
        %v653 = vadd.f32 %v650, %v652
        %v654 = vstv %s219
        %v655 = vmul.f32 %v614, %v654
        %v656 = vadd.f32 %v653, %v655
        %v657 = vstv %s229
        %v658 = vadd.f32 %v656, %v657
        %v659 = vand.u32 2147483647, %v658
        %v660 = vsub.f32 0.0, %v659
        %v661 = vmul.f32 %v660, 1.442695
        %v662 = vpow.pop %v661
        %v663 = vmul.f32 %v662, %v662
        %v664 = vmul.f32 %v662, 2.0
        %vm665 = vcmp.ge.f32.partialorder %v658, 0.0
        %v666 = vsel %vm665, 1.0, %v663
        %v667 = vadd.f32 %v664, %v666
        %v668 = vmul.f32 %v663, 2.0
        %v669 = vsel %vm665, %v668, 2.0
        %v670 = vadd.f32 %v667, %v669
        %v671 = vmul.f32 %v658, %v667
        %v672 = vrcp.pop %v670
        %v673 = vmul.f32 %v670, %v672
        %v674 = vsub.f32 2.0, %v673
        %v675 = vmul.f32 %v672, %v674
        %v676 = vmul.f32 %v671, %v675
        %v677 = vstv %s220
        %v678 = vmul.f32 %v530, %v677
        %v679 = vstv %s221
        %v680 = vmul.f32 %v558, %v679
        %v681 = vadd.f32 %v678, %v680
        %v682 = vstv %s222
        %v683 = vmul.f32 %v586, %v682
        %v684 = vadd.f32 %v681, %v683
        %v685 = vstv %s223
        %v686 = vmul.f32 %v614, %v685
        %v687 = vadd.f32 %v684, %v686
        %v688 = vstv %s230
        %v689 = vadd.f32 %v687, %v688
        %v690 = vand.u32 2147483647, %v689
        %v691 = vsub.f32 0.0, %v690
        %v692 = vmul.f32 %v691, 1.442695
        %v693 = vpow.pop %v692
        %v694 = vmul.f32 %v693, %v693
        %v695 = vmul.f32 %v693, 2.0
        %vm696 = vcmp.ge.f32.partialorder %v689, 0.0
        %v697 = vsel %vm696, 1.0, %v694
        %v698 = vadd.f32 %v695, %v697
        %v699 = vmul.f32 %v694, 2.0
        %v700 = vsel %vm696, %v699, 2.0
        %v701 = vadd.f32 %v698, %v700
        %v702 = vmul.f32 %v689, %v698
        %v703 = vrcp.pop %v701
        %v704 = vmul.f32 %v701, %v703
        %v705 = vsub.f32 2.0, %v704
        %v706 = vmul.f32 %v703, %v705
        %v707 = vmul.f32 %v702, %v706
        %v708 = vstv %s224
        %v709 = vmul.f32 %v530, %v708
        %v710 = vstv %s225
        %v711 = vmul.f32 %v558, %v710
        %v712 = vadd.f32 %v709, %v711
        %v713 = vstv %s226
        %v714 = vmul.f32 %v586, %v713
        %v715 = vadd.f32 %v712, %v714
        %v716 = vstv %s227
        %v717 = vmul.f32 %v614, %v716
        %v718 = vadd.f32 %v715, %v717
        %v719 = vstv %s231
        %v720 = vadd.f32 %v718, %v719
        %v721 = vand.u32 2147483647, %v720
        %v722 = vsub.f32 0.0, %v721
        %v723 = vmul.f32 %v722, 1.442695
        %v724 = vpow.pop %v723
        %v725 = vmul.f32 %v724, %v724
        %v726 = vmul.f32 %v724, 2.0
        %vm727 = vcmp.ge.f32.partialorder %v720, 0.0
        %v728 = vsel %vm727, 1.0, %v725
        %v729 = vadd.f32 %v726, %v728
        %v730 = vmul.f32 %v725, 2.0
        %v731 = vsel %vm727, %v730, 2.0
        %v732 = vadd.f32 %v729, %v731
        %v733 = vmul.f32 %v720, %v729
        %v734 = vrcp.pop %v732
        %v735 = vmul.f32 %v732, %v734
        %v736 = vsub.f32 2.0, %v735
        %v737 = vmul.f32 %v734, %v736
        %v738 = vmul.f32 %v733, %v737
        %v739 = vstv %s232
        %v740 = vmul.f32 %v645, %v739
        %v741 = vstv %s233
        %v742 = vmul.f32 %v676, %v741
        %v743 = vadd.f32 %v740, %v742
        %v744 = vstv %s234
        %v745 = vmul.f32 %v707, %v744
        %v746 = vadd.f32 %v743, %v745
        %v747 = vstv %s235
        %v748 = vmul.f32 %v738, %v747
        %v749 = vadd.f32 %v746, %v748
        %v750 = vstv %s248
        %v751 = vadd.f32 %v749, %v750
        %v752 = vadd.f32 %v751, %v530
        %v753 = vadd.f32 %v752, %v252
        %754 = vst [vmem:[%s156] sm:$0xff] %v753
        %v755 = vstv %s236
        %v756 = vmul.f32 %v645, %v755
        %v757 = vstv %s237
        %v758 = vmul.f32 %v676, %v757
        %v759 = vadd.f32 %v756, %v758
        %v760 = vstv %s238
        %v761 = vmul.f32 %v707, %v760
        %v762 = vadd.f32 %v759, %v761
        %v763 = vstv %s239
        %v764 = vmul.f32 %v738, %v763
        %v765 = vadd.f32 %v762, %v764
        %v766 = vstv %s249
        %v767 = vadd.f32 %v765, %v766
        %v768 = vadd.f32 %v767, %v558
        %v769 = vadd.f32 %v768, %v254
        %s770 = scalar_lea.vmem %s156, 8 [#allocation7]
        %771 = vst [vmem:[%s770] sm:$0xff] %v769
        %v772 = vstv %s240
        %v773 = vmul.f32 %v645, %v772
        %v774 = vstv %s241
        %v775 = vmul.f32 %v676, %v774
        %v776 = vadd.f32 %v773, %v775
        %v777 = vstv %s242
        %v778 = vmul.f32 %v707, %v777
        %v779 = vadd.f32 %v776, %v778
        %v780 = vstv %s243
        %v781 = vmul.f32 %v738, %v780
        %v782 = vadd.f32 %v779, %v781
        %v783 = vstv %s250
        %v784 = vadd.f32 %v782, %v783
        %v785 = vadd.f32 %v784, %v586
        %v786 = vadd.f32 %v785, %v256
        %s787 = scalar_lea.vmem %s156, 16 [#allocation7]
        %788 = vst [vmem:[%s787] sm:$0xff] %v786
        %v789 = vstv %s244
        %v790 = vmul.f32 %v645, %v789
        %v791 = vstv %s245
        %v792 = vmul.f32 %v676, %v791
        %v793 = vadd.f32 %v790, %v792
        %v794 = vstv %s246
        %v795 = vmul.f32 %v707, %v794
        %v796 = vadd.f32 %v793, %v795
        %v797 = vstv %s247
        %v798 = vmul.f32 %v738, %v797
        %v799 = vadd.f32 %v796, %v798
        %v800 = vstv %s251
        %v801 = vadd.f32 %v799, %v800
        %v802 = vadd.f32 %v801, %v614
        %v803 = vadd.f32 %v802, %v258
        %s804 = scalar_lea.vmem %s156, 24 [#allocation7]
        %805 = vst [vmem:[%s804] sm:$0xff] %v803
        %s806 = sand.u32 %s73, 1
        %s807 = scalar_lea.sflag [#allocation6], %s806
        %s808 = sand.u32 %s73, 1
        %s809 = smul.addr %s808, 32
        %s810 = scalar_lea.vmem [#allocation7], %s809
        // Predicated region
        $region29: #{tpu_custom_call.1} parent=23 // pred_check
          %p811 = pneg %p83
        $region30: #{tpu_custom_call.1} parent=23 // pred_check_branch
          %813 = sbr.rel (%p811) target = $region32
        $region31: #{tpu_custom_call.1} parent=23 // pred_region
          %s815 = ssub.s32 512, 512
          %816 = vsyncadd %s807, %s815
          %s817 = smul.addr %s27, 4
          %s818 = sadd.s32 %s28, %s817
          %s819 = smul.addr %s818, 128
          %s820 = scalar_lea.hbm %s2, %s819
          %s821 = sshll.u32 %s810, 4
          %s822 = int_to_ptr.vmem [resolvable:$true] %s821
          %827 = dma.vmem_to_hbm [thread:$0]  %s822, 512, %s820, %s807, 128, 128, 8
        $region32: #{tpu_custom_call.1} parent=23 // pred_fallthru
          _
      $region24: #{tpu_custom_call.1} parent=5 // pred_fallthru
        _
      %p828 = scmp.le.s32.totalorder 2, %s18
      // Predicated region
      $region33: #{tpu_custom_call.1} parent=5 // pred_check
        %p829 = pneg %p828
      $region34: #{tpu_custom_call.1} parent=5 // pred_check_branch
        %831 = sbr.rel (%p829) target = $region36
      $region35: #{tpu_custom_call.1} parent=5 // pred_region
        %s832 = ssub.s32 %s18, 2
        // Predicated region
        $region37: #{tpu_custom_call.1} parent=35 // pred_check
          %p833 = pneg %p89
        $region38: #{tpu_custom_call.1} parent=35 // pred_check_branch
          %835 = sbr.rel (%p833) target = $region40
        $region39: #{tpu_custom_call.1} parent=35 // pred_region
          %s836 = sand.u32 %s74, 1
          %s837 = scalar_lea.sflag [#allocation6], %s836
          %s838 = sand.u32 %s74, 1
          %s839 = smul.addr %s838, 32
          %s840 = scalar_lea.vmem [#allocation7], %s839
          %841 = dma.done %s837, 512
        $region40: #{tpu_custom_call.1} parent=35 // pred_fallthru
          _
      $region36: #{tpu_custom_call.1} parent=5 // pred_fallthru
        _
    $region6: #{tpu_custom_call.1} parent=1 // loop_footer
      %s22 = sadd.s32 1, %s18
    $region7: #{tpu_custom_call.1} parent=1 // loop_footer_branch
      %17 = sbr.rel target = $region3
    $region8: #{tpu_custom_call.1} parent=1 // loop_exit
      _
    %842 = vsyncpa [#allocation5], 1
    %s843 = scalar_lea.sflag [#allocation5], 1
    %844 = vsyncpa %s843, 1
    %845 = vsyncpa [#allocation6], 1
    %s846 = scalar_lea.sflag [#allocation6], 1
    %847 = vsyncpa %s846, 1

</llo_original>
